<compile_context>
chip_gen: v7x
topology: tpu7x:2x2x1
jax: 0.10.0
libtpu: 0.0.40
codegen_flags: <defaults>
</compile_context>

<pallas_src>
import functools

import jax
import jax.numpy as jnp
from jax.experimental import pallas as pl
from jax.experimental.pallas import tpu as pltpu

LN_EPS = 1e-5                      # PyTorch nn.LayerNorm default
MATMUL_DTYPE = jnp.bfloat16        # MXU operand + intermediate-activation dtype
                                   # (set to jnp.float32 for strict f32 parity)
VMEM_LIMIT = 48 * 1024 * 1024      # explicit cap with headroom for v7x (64 MiB)
VMEM_BUDGET = 40 * 1024 * 1024     # planning budget (leave slack vs the cap)
ROW_TILE = 512                     # preferred token rows per block (x8 sublane)


def _round_up(x, m):
    return (x + m - 1) // m * m


def _itemsize(dt):
    return jax.dtypes.canonicalize_dtype(dt).itemsize


def _select_row_tile(m, per_row_bytes, resident_bytes):
    """Largest row tile (multiple of 8, <= ROW_TILE) whose double-buffered
    streaming footprint plus the resident weight footprint fits the budget."""
    tm = min(ROW_TILE, _round_up(m, 8))
    while tm > 8 and resident_bytes + 2 * tm * per_row_bytes > VMEM_BUDGET:
        tm = _round_up(max(8, tm // 2), 8)
    return tm


def _pad_rows(a, rows):
    if a.shape[0] == rows:
        return a
    return jnp.pad(a, ((0, rows - a.shape[0]), (0, 0)))


def _head_group_size(num_heads, head_dim):
    """Smallest divisor g of num_heads with 128-lane-aligned g*head_dim;
    falls back to all heads (full-width blocks) for tiny models."""
    for g in range(1, num_heads + 1):
        if num_heads % g == 0 and (g * head_dim) % 128 == 0:
            return g
    return num_heads


def _gelu_tanh(x):
    # tanh-form GELU (EUP); differs from exact-erf nn.GELU by ~1e-3 max abs.
    c = 0.7978845608028654  # sqrt(2/pi)
    return 0.5 * x * (1.0 + jnp.tanh(c * (x + 0.044715 * x * x * x)))


# --------------------- fused LayerNorm + Linear (+ GELU) ---------------------
def _ln_linear_kernel(x_ref, g_ref, b_ref, w_ref, bias_ref, o_ref, *, activation):
    x = x_ref[...].astype(jnp.float32)
    mean = jnp.mean(x, axis=-1, keepdims=True)
    xc = x - mean
    var = jnp.mean(xc * xc, axis=-1, keepdims=True)
    inv = jax.lax.rsqrt(var + LN_EPS)
    xn = xc * inv * g_ref[...] + b_ref[...]
    y = jnp.dot(xn.astype(MATMUL_DTYPE), w_ref[...],
                preferred_element_type=jnp.float32)
    y = y + bias_ref[...]
    if activation == "gelu":
        y = _gelu_tanh(y)
    o_ref[...] = y.astype(o_ref.dtype)


def ln_linear(x, gamma, beta, w, b, activation=None, out_dtype=None):
    """LayerNorm(x) @ w + b (+GELU).  x: (M, K), w: (K, Nout) (weight resident)."""
    M, K = x.shape
    Nout = w.shape[1]
    out_dtype = out_dtype if out_dtype is not None else x.dtype
    per_row = K * _itemsize(x.dtype) + Nout * _itemsize(out_dtype)
    resident = 2 * (K * Nout * _itemsize(w.dtype) + (Nout + 2 * K) * 4)
    tm = _select_row_tile(M, per_row, resident)
    Mp = _round_up(M, tm)
    xp = _pad_rows(x, Mp)
    kernel = functools.partial(_ln_linear_kernel, activation=activation)
    out = pl.pallas_call(
        kernel,
        out_shape=jax.ShapeDtypeStruct((Mp, Nout), out_dtype),
        grid=(Mp // tm,),
        in_specs=[
            pl.BlockSpec((tm, K), lambda i: (i, 0)),
            pl.BlockSpec((1, K), lambda i: (0, 0)),
            pl.BlockSpec((1, K), lambda i: (0, 0)),
            pl.BlockSpec((K, Nout), lambda i: (0, 0)),     # weight resident
            pl.BlockSpec((1, Nout), lambda i: (0, 0)),
        ],
        out_specs=pl.BlockSpec((tm, Nout), lambda i: (i, 0)),
        compiler_params=pltpu.CompilerParams(
            dimension_semantics=("parallel",),
            vmem_limit_bytes=VMEM_LIMIT),
    )(xp, gamma.reshape(1, K), beta.reshape(1, K), w, b.reshape(1, Nout))
    return out if Mp == M else out[:M]


# --------------------- Linear + bias + residual (weight resident) ------------
def _linear_residual_kernel(x_ref, w_ref, bias_ref, res_ref, o_ref):
    y = jnp.dot(x_ref[...].astype(MATMUL_DTYPE), w_ref[...],
                preferred_element_type=jnp.float32)
    y = y + bias_ref[...] + res_ref[...].astype(jnp.float32)
    o_ref[...] = y.astype(o_ref.dtype)


def linear_residual(x, w, b, residual):
    """x @ w + b + residual.  Full-K, full-Nout weight-resident block; output
    keeps the residual stream's dtype (f32)."""
    M, K = x.shape
    Nout = w.shape[1]
    out_dtype = residual.dtype
    per_row = (K * _itemsize(x.dtype)
               + Nout * _itemsize(residual.dtype)
               + Nout * _itemsize(out_dtype))
    resident = 2 * (K * Nout * _itemsize(w.dtype) + Nout * 4)
    tm = _select_row_tile(M, per_row, resident)
    Mp = _round_up(M, tm)
    xp = _pad_rows(x, Mp)
    rp = _pad_rows(residual, Mp)
    out = pl.pallas_call(
        _linear_residual_kernel,
        out_shape=jax.ShapeDtypeStruct((Mp, Nout), out_dtype),
        grid=(Mp // tm,),
        in_specs=[
            pl.BlockSpec((tm, K), lambda i: (i, 0)),
            pl.BlockSpec((K, Nout), lambda i: (0, 0)),     # weight resident
            pl.BlockSpec((1, Nout), lambda i: (0, 0)),
            pl.BlockSpec((tm, Nout), lambda i: (i, 0)),
        ],
        out_specs=pl.BlockSpec((tm, Nout), lambda i: (i, 0)),
        compiler_params=pltpu.CompilerParams(
            dimension_semantics=("parallel",),
            vmem_limit_bytes=VMEM_LIMIT),
    )(xp, w, b.reshape(1, Nout), rp)
    return out if Mp == M else out[:M]


# ------------------- Multi-head attention (batch x head-group grid) ----------
def _attention_kernel(qkv_ref, o_ref, *, heads_per_group, head_dim):
    g, dh = heads_per_group, head_dim
    outs = []
    for hh in range(g):                                   # small static unroll
        q = qkv_ref[:, hh * dh:(hh + 1) * dh]             # bf16, scale pre-folded
        k = qkv_ref[:, g * dh + hh * dh: g * dh + (hh + 1) * dh]
        v = qkv_ref[:, 2 * g * dh + hh * dh: 2 * g * dh + (hh + 1) * dh]
        s = jax.lax.dot_general(q, k, (((1,), (1,)), ((), ())),
                                preferred_element_type=jnp.float32)   # (L, L)
        m = jnp.max(s, axis=-1, keepdims=True)
        p = jnp.exp(s - m)
        l = jnp.sum(p, axis=-1, keepdims=True)
        o = jnp.dot(p.astype(v.dtype), v, preferred_element_type=jnp.float32)
        outs.append(o * pl.reciprocal(l, approx=True))
    # Single full-width, lane-aligned store for the whole head group.
    o_ref[...] = jnp.concatenate(outs, axis=-1).astype(o_ref.dtype)


def mha_attention(qkv, num_heads):
    """qkv: (N, L, 3E), columns permuted per head-group [Q|K|V].  -> (N, L, E)
    with standard head-concatenated column order."""
    N, L, E3 = qkv.shape
    E = E3 // 3
    dh = E // num_heads
    g = _head_group_size(num_heads, dh)
    w_in, w_out = 3 * g * dh, g * dh
    kernel = functools.partial(_attention_kernel, heads_per_group=g, head_dim=dh)
    return pl.pallas_call(
        kernel,
        out_shape=jax.ShapeDtypeStruct((N, L, E), qkv.dtype),
        grid=(N, num_heads // g),
        in_specs=[pl.BlockSpec((None, L, w_in), lambda b, p: (b, 0, p))],
        out_specs=pl.BlockSpec((None, L, w_out), lambda b, p: (b, 0, p)),
        compiler_params=pltpu.CompilerParams(
            dimension_semantics=("parallel", "parallel"),
            vmem_limit_bytes=VMEM_LIMIT),
    )(qkv)


# ------------------------------ Encoder forward -------------------------------
def transformer_encoder(x, params, num_heads):
    """x: (L, N, E) f32 — PyTorch batch_first=False layout."""
    L, N, E = x.shape
    assert E % num_heads == 0

    # Batch-major token matrix so attention tiles are per-batch lane-dense.
    xt = jnp.transpose(x, (1, 0, 2)).reshape(N * L, E)

    # --- Attention block: LN1 fused into the QKV projection (bf16 out) ---
    qkv = ln_linear(xt, params["ln1_g"], params["ln1_b"],
                    params["in_proj_w"], params["in_proj_b"],
                    out_dtype=MATMUL_DTYPE)                       # (N*L, 3E)
    attn = mha_attention(qkv.reshape(N, L, 3 * E), num_heads)     # (N, L, E) bf16
    xt = linear_residual(attn.reshape(N * L, E),
                         params["out_proj_w"], params["out_proj_b"],
                         residual=xt)                             # f32 residual

    # --- MLP block: LN2 fused into fc1 (+GELU, bf16 out), residual into fc2 ---
    h = ln_linear(xt, params["ln2_g"], params["ln2_b"],
                  params["fc1_w"], params["fc1_b"], activation="gelu",
                  out_dtype=MATMUL_DTYPE)
    xt = linear_residual(h, params["fc2_w"], params["fc2_b"], residual=xt)

    return xt.reshape(N, L, E).transpose(1, 0, 2)


def _qkv_permutation(E, num_heads, group):
    dh = E // num_heads
    idx = []
    for p in range(num_heads // group):
        heads = range(p * group, (p + 1) * group)
        for part in range(3):                       # Q, K, V
            for h in heads:
                start = part * E + h * dh
                idx.extend(range(start, start + dh))
    return jnp.asarray(idx, dtype=jnp.int32)


def prepare_params(torch_style_params, num_heads):
    """One-time (outside jit) weight prep: transpose PyTorch (out,in) weights to
    (in,out), fold the 1/sqrt(Dh) softmax scale into the Q projection, permute
    the QKV columns into per-head-group [Q|K|V] order, and cast matmul weights
    to bf16 once (halves weight HBM traffic; accumulation stays f32)."""
    p = torch_style_params
    E = p["ln1_g"].shape[0]
    dh = E // num_heads
    g = _head_group_size(num_heads, dh)
    scale = 1.0 / float(dh) ** 0.5

    in_w = p["in_proj_w"].T.astype(jnp.float32)     # (E, 3E)
    in_b = p["in_proj_b"].astype(jnp.float32)       # (3E,)
    in_w = in_w.at[:, :E].multiply(scale)           # fold softmax scale into Q
    in_b = in_b.at[:E].multiply(scale)
    perm = _qkv_permutation(E, num_heads, g)
    in_w = in_w[:, perm]
    in_b = in_b[perm]

    return {
        "ln1_g": p["ln1_g"].astype(jnp.float32),
        "ln1_b": p["ln1_b"].astype(jnp.float32),
        "ln2_g": p["ln2_g"].astype(jnp.float32),
        "ln2_b": p["ln2_b"].astype(jnp.float32),
        "in_proj_w": in_w.astype(MATMUL_DTYPE),                # (E, 3E) permuted
        "in_proj_b": in_b,
        "out_proj_w": p["out_proj_w"].T.astype(MATMUL_DTYPE),  # (E, E)
        "out_proj_b": p["out_proj_b"].astype(jnp.float32),
        "fc1_w": p["fc1_w"].T.astype(MATMUL_DTYPE),            # (E, MLP)
        "fc1_b": p["fc1_b"].astype(jnp.float32),
        "fc2_w": p["fc2_w"].T.astype(MATMUL_DTYPE),            # (MLP, E)
        "fc2_b": p["fc2_b"].astype(jnp.float32),
    }


# ------------------------- pure-JAX f32 reference -----------------------------
def reference_encoder(x, p, num_heads):
    L, N, E = x.shape
    dh = E // num_heads

    def ln(v, g, b):
        mu = v.mean(-1, keepdims=True)
        var = ((v - mu) ** 2).mean(-1, keepdims=True)
        return (v - mu) * jax.lax.rsqrt(var + LN_EPS) * g + b

    x1 = ln(x, p["ln1_g"], p["ln1_b"])
    qkv = x1 @ p["in_proj_w"].T + p["in_proj_b"]
    q, k, v = jnp.split(qkv, 3, axis=-1)

    def split_heads(t):
        return t.reshape(L, N, num_heads, dh).transpose(1, 2, 0, 3)

    qh, kh, vh = map(split_heads, (q, k, v))
    s = jnp.einsum("nhld,nhmd->nhlm", qh, kh) / (dh ** 0.5)
    a = jax.nn.softmax(s, axis=-1)
    o = jnp.einsum("nhlm,nhmd->nhld", a, vh)
    o = o.transpose(2, 0, 1, 3).reshape(L, N, E)
    attn = o @ p["out_proj_w"].T + p["out_proj_b"]
    x2 = x + attn
    x3 = ln(x2, p["ln2_g"], p["ln2_b"])
    h = jax.nn.gelu(x3 @ p["fc1_w"].T + p["fc1_b"], approximate=True)
    return x2 + h @ p["fc2_w"].T + p["fc2_b"]


if __name__ == "__main__":
    # Small shapes consistent with the module: seq=8, batch=2, embed=256,
    # heads=4 (head_dim=64 -> head-pair 128-lane blocks), mlp_dim=512.
    L, N, E, H, MLP = 8, 2, 256, 4, 512

    keys = jax.random.split(jax.random.PRNGKey(0), 9)
    torch_params = {
        "ln1_g": jnp.ones((E,), jnp.float32),
        "ln1_b": jnp.zeros((E,), jnp.float32),
        "ln2_g": jnp.ones((E,), jnp.float32),
        "ln2_b": jnp.zeros((E,), jnp.float32),
        "in_proj_w": 0.05 * jax.random.normal(keys[0], (3 * E, E), jnp.float32),
        "in_proj_b": 0.05 * jax.random.normal(keys[1], (3 * E,), jnp.float32),
        "out_proj_w": 0.05 * jax.random.normal(keys[2], (E, E), jnp.float32),
        "out_proj_b": 0.05 * jax.random.normal(keys[3], (E,), jnp.float32),
        "fc1_w": 0.05 * jax.random.normal(keys[4], (MLP, E), jnp.float32),
        "fc1_b": 0.05 * jax.random.normal(keys[5], (MLP,), jnp.float32),
        "fc2_w": 0.05 * jax.random.normal(keys[6], (E, MLP), jnp.float32),
        "fc2_b": 0.05 * jax.random.normal(keys[7], (E,), jnp.float32),
    }
    params = prepare_params(torch_params, num_heads=H)
    x = jax.random.normal(keys[8], (L, N, E), jnp.float32)

    fwd = jax.jit(functools.partial(transformer_encoder, num_heads=H))
    out = jax.block_until_ready(fwd(x, params))
    assert out.shape == (L, N, E) and out.dtype == jnp.float32
    assert bool(jnp.all(jnp.isfinite(out)))

    ref = reference_encoder(x, torch_params, H)
    err = float(jnp.max(jnp.abs(out - ref)))
    assert err < 0.15, f"max abs error vs reference too large: {err}"
    print("KERNEL_OK")
</pallas_src>

<mosaic_0001>
module attributes {stable_mosaic.version = 11 : i64} {
  func.func @_attention_kernel(%arg0: i32, %arg1: i32, %arg2: memref<1x8x384xbf16, #tpu.memory_space<vmem>>, %arg3: memref<1x8x128xbf16, #tpu.memory_space<vmem>>) attributes {dimension_semantics = [#tpu.dimension_semantics<parallel>, #tpu.dimension_semantics<parallel>], iteration_bounds = array<i64: 2, 2>, scalar_prefetch = 0 : i64, scratch_operands = 0 : i64, tpu.core_type = #tpu.core_type<tc>, window_params = [{transform_indices = @transform_0, window_bounds = array<i64: 1, 8, 384>}, {transform_indices = @transform_1, window_bounds = array<i64: 1, 8, 128>}]} {
    %c0 = arith.constant 0 : index
    %c0_0 = arith.constant 0 : index
    %c0_1 = arith.constant 0 : index
    %0 = vector.load %arg2[%c0, %c0_0, %c0_1] : memref<1x8x384xbf16, #tpu.memory_space<vmem>>, vector<1x8x64xbf16>
    %1 = vector.shape_cast %0 : vector<1x8x64xbf16> to vector<8x64xbf16>
    %c0_2 = arith.constant 0 : index
    %c0_3 = arith.constant 0 : index
    %c128 = arith.constant 128 : index
    %2 = vector.load %arg2[%c0_2, %c0_3, %c128] : memref<1x8x384xbf16, #tpu.memory_space<vmem>>, vector<1x8x64xbf16>
    %3 = vector.shape_cast %2 : vector<1x8x64xbf16> to vector<8x64xbf16>
    %c0_4 = arith.constant 0 : index
    %c0_5 = arith.constant 0 : index
    %c256 = arith.constant 256 : index
    %4 = vector.load %arg2[%c0_4, %c0_5, %c256] : memref<1x8x384xbf16, #tpu.memory_space<vmem>>, vector<1x8x64xbf16>
    %5 = vector.shape_cast %4 : vector<1x8x64xbf16> to vector<8x64xbf16>
    %cst = arith.constant dense<0.000000e+00> : vector<8x8xf32>
    %6 = tpu.matmul %1, %3, %cst {dimension_numbers = #tpu.dot_dimension_numbers<[1], [1], [0], [0], [0, 0, 1, 0], [], []>} : vector<8x64xbf16>, vector<8x64xbf16>, vector<8x8xf32> -> vector<8x8xf32>
    %cst_6 = arith.constant dense<0xFF800000> : vector<8xf32>
    %7 = vector.multi_reduction <maximumf>, %6, %cst_6 [1] : vector<8x8xf32> to vector<8xf32>
    %8 = vector.shape_cast %7 : vector<8xf32> to vector<8x1xf32>
    %9 = vector.broadcast %8 : vector<8x1xf32> to vector<8x8xf32>
    %10 = arith.subf %6, %9 : vector<8x8xf32>
    %11 = math.exp %10 : vector<8x8xf32>
    %cst_7 = arith.constant dense<0.000000e+00> : vector<8xf32>
    %12 = vector.multi_reduction <add>, %11, %cst_7 [1] : vector<8x8xf32> to vector<8xf32>
    %13 = vector.shape_cast %12 : vector<8xf32> to vector<8x1xf32>
    %14 = arith.truncf %11 : vector<8x8xf32> to vector<8x8xbf16>
    %cst_8 = arith.constant dense<0.000000e+00> : vector<8x64xf32>
    %15 = tpu.matmul %14, %5, %cst_8 {dimension_numbers = #tpu.dot_dimension_numbers<[1], [0], [0], [1], [0, 0, 1, 1], [], []>} : vector<8x8xbf16>, vector<8x64xbf16>, vector<8x64xf32> -> vector<8x64xf32>
    %16 = tpu.reciprocal %13 {approx = true} : vector<8x1xf32> -> vector<8x1xf32>
    %17 = vector.broadcast %16 : vector<8x1xf32> to vector<8x64xf32>
    %18 = arith.mulf %15, %17 : vector<8x64xf32>
    %c0_9 = arith.constant 0 : index
    %c0_10 = arith.constant 0 : index
    %c64 = arith.constant 64 : index
    %19 = vector.load %arg2[%c0_9, %c0_10, %c64] : memref<1x8x384xbf16, #tpu.memory_space<vmem>>, vector<1x8x64xbf16>
    %20 = vector.shape_cast %19 : vector<1x8x64xbf16> to vector<8x64xbf16>
    %c0_11 = arith.constant 0 : index
    %c0_12 = arith.constant 0 : index
    %c192 = arith.constant 192 : index
    %21 = vector.load %arg2[%c0_11, %c0_12, %c192] : memref<1x8x384xbf16, #tpu.memory_space<vmem>>, vector<1x8x64xbf16>
    %22 = vector.shape_cast %21 : vector<1x8x64xbf16> to vector<8x64xbf16>
    %c0_13 = arith.constant 0 : index
    %c0_14 = arith.constant 0 : index
    %c320 = arith.constant 320 : index
    %23 = vector.load %arg2[%c0_13, %c0_14, %c320] : memref<1x8x384xbf16, #tpu.memory_space<vmem>>, vector<1x8x64xbf16>
    %24 = vector.shape_cast %23 : vector<1x8x64xbf16> to vector<8x64xbf16>
    %cst_15 = arith.constant dense<0.000000e+00> : vector<8x8xf32>
    %25 = tpu.matmul %20, %22, %cst_15 {dimension_numbers = #tpu.dot_dimension_numbers<[1], [1], [0], [0], [0, 0, 1, 0], [], []>} : vector<8x64xbf16>, vector<8x64xbf16>, vector<8x8xf32> -> vector<8x8xf32>
    %cst_16 = arith.constant dense<0xFF800000> : vector<8xf32>
    %26 = vector.multi_reduction <maximumf>, %25, %cst_16 [1] : vector<8x8xf32> to vector<8xf32>
    %27 = vector.shape_cast %26 : vector<8xf32> to vector<8x1xf32>
    %28 = vector.broadcast %27 : vector<8x1xf32> to vector<8x8xf32>
    %29 = arith.subf %25, %28 : vector<8x8xf32>
    %30 = math.exp %29 : vector<8x8xf32>
    %cst_17 = arith.constant dense<0.000000e+00> : vector<8xf32>
    %31 = vector.multi_reduction <add>, %30, %cst_17 [1] : vector<8x8xf32> to vector<8xf32>
    %32 = vector.shape_cast %31 : vector<8xf32> to vector<8x1xf32>
    %33 = arith.truncf %30 : vector<8x8xf32> to vector<8x8xbf16>
    %cst_18 = arith.constant dense<0.000000e+00> : vector<8x64xf32>
    %34 = tpu.matmul %33, %24, %cst_18 {dimension_numbers = #tpu.dot_dimension_numbers<[1], [0], [0], [1], [0, 0, 1, 1], [], []>} : vector<8x8xbf16>, vector<8x64xbf16>, vector<8x64xf32> -> vector<8x64xf32>
    %35 = tpu.reciprocal %32 {approx = true} : vector<8x1xf32> -> vector<8x1xf32>
    %36 = vector.broadcast %35 : vector<8x1xf32> to vector<8x64xf32>
    %37 = arith.mulf %34, %36 : vector<8x64xf32>
    %38 = tpu.concatenate %18, %37 in 1 : vector<8x64xf32>, vector<8x64xf32> -> vector<8x128xf32>
    %39 = arith.truncf %38 : vector<8x128xf32> to vector<8x128xbf16>
    %c0_19 = arith.constant 0 : index
    %c0_20 = arith.constant 0 : index
    %c0_21 = arith.constant 0 : index
    %40 = vector.load %arg3[%c0_19, %c0_20, %c0_21] : memref<1x8x128xbf16, #tpu.memory_space<vmem>>, vector<1x8x128xbf16>
    %41 = vector.shape_cast %40 : vector<1x8x128xbf16> to vector<8x128xbf16>
    %42 = vector.shape_cast %39 : vector<8x128xbf16> to vector<1x8x128xbf16>
    tpu.vector_store %arg3[%c0_19, %c0_20, %c0_21], %42 {strides = array<i32>} : memref<1x8x128xbf16, #tpu.memory_space<vmem>>, vector<1x8x128xbf16>,
    return
  }
  func.func @transform_0(%arg0: i32, %arg1: i32) -> (i32, i32, i32) {
    %c0_i32 = arith.constant 0 : i32
    %c0_i32_0 = arith.constant 0 : i32
    return %arg0, %c0_i32, %arg1 : i32, i32, i32
  }
  func.func @transform_1(%arg0: i32, %arg1: i32) -> (i32, i32, i32) {
    %c0_i32 = arith.constant 0 : i32
    %c0_i32_0 = arith.constant 0 : i32
    return %arg0, %c0_i32, %arg1 : i32, i32, i32
  }
}

module attributes {stable_mosaic.version = 11 : i64} {
  func.func @_ln_linear_kernel(%arg0: i32, %arg1: memref<16x256xf32, #tpu.memory_space<vmem>>, %arg2: memref<1x256xf32, #tpu.memory_space<vmem>>, %arg3: memref<1x256xf32, #tpu.memory_space<vmem>>, %arg4: memref<256x768xbf16, #tpu.memory_space<vmem>>, %arg5: memref<1x768xf32, #tpu.memory_space<vmem>>, %arg6: memref<16x768xbf16, #tpu.memory_space<vmem>>) attributes {dimension_semantics = [#tpu.dimension_semantics<parallel>], iteration_bounds = array<i64: 1>, scalar_prefetch = 0 : i64, scratch_operands = 0 : i64, tpu.core_type = #tpu.core_type<tc>, window_params = [{transform_indices = @transform_0, window_bounds = array<i64: 16, 256>}, {pipeline_mode = #tpu.pipeline_mode<synchronous>, transform_indices = @transform_1, window_bounds = array<i64: 1, 256>}, {pipeline_mode = #tpu.pipeline_mode<synchronous>, transform_indices = @transform_2, window_bounds = array<i64: 1, 256>}, {pipeline_mode = #tpu.pipeline_mode<synchronous>, transform_indices = @transform_3, window_bounds = array<i64: 256, 768>}, {pipeline_mode = #tpu.pipeline_mode<synchronous>, transform_indices = @transform_4, window_bounds = array<i64: 1, 768>}, {transform_indices = @transform_5, window_bounds = array<i64: 16, 768>}]} {
    %c0 = arith.constant 0 : index
    %c0_0 = arith.constant 0 : index
    %0 = vector.load %arg1[%c0, %c0_0] : memref<16x256xf32, #tpu.memory_space<vmem>>, vector<16x256xf32>
    %cst = arith.constant dense<0.000000e+00> : vector<16xf32>
    %1 = vector.multi_reduction <add>, %0, %cst [1] : vector<16x256xf32> to vector<16xf32>
    %2 = vector.shape_cast %1 : vector<16xf32> to vector<16x1xf32>
    %cst_1 = arith.constant 2.560000e+02 : f32
    %3 = vector.broadcast %cst_1 : f32 to vector<16x1xf32>
    %4 = arith.divf %2, %3 : vector<16x1xf32>
    %5 = vector.broadcast %4 : vector<16x1xf32> to vector<16x256xf32>
    %6 = arith.subf %0, %5 : vector<16x256xf32>
    %7 = arith.mulf %6, %6 : vector<16x256xf32>
    %cst_2 = arith.constant dense<0.000000e+00> : vector<16xf32>
    %8 = vector.multi_reduction <add>, %7, %cst_2 [1] : vector<16x256xf32> to vector<16xf32>
    %9 = vector.shape_cast %8 : vector<16xf32> to vector<16x1xf32>
    %cst_3 = arith.constant 2.560000e+02 : f32
    %10 = vector.broadcast %cst_3 : f32 to vector<16x1xf32>
    %11 = arith.divf %9, %10 : vector<16x1xf32>
    %cst_4 = arith.constant 9.99999974E-6 : f32
    %12 = vector.broadcast %cst_4 : f32 to vector<16x1xf32>
    %13 = arith.addf %11, %12 : vector<16x1xf32>
    %14 = math.rsqrt %13 : vector<16x1xf32>
    %15 = vector.broadcast %14 : vector<16x1xf32> to vector<16x256xf32>
    %16 = arith.mulf %6, %15 : vector<16x256xf32>
    %c0_5 = arith.constant 0 : index
    %c0_6 = arith.constant 0 : index
    %17 = vector.load %arg2[%c0_5, %c0_6] : memref<1x256xf32, #tpu.memory_space<vmem>>, vector<1x256xf32>
    %18 = vector.broadcast %17 : vector<1x256xf32> to vector<16x256xf32>
    %19 = arith.mulf %16, %18 : vector<16x256xf32>
    %c0_7 = arith.constant 0 : index
    %c0_8 = arith.constant 0 : index
    %20 = vector.load %arg3[%c0_7, %c0_8] : memref<1x256xf32, #tpu.memory_space<vmem>>, vector<1x256xf32>
    %21 = vector.broadcast %20 : vector<1x256xf32> to vector<16x256xf32>
    %22 = arith.addf %19, %21 : vector<16x256xf32>
    %23 = arith.truncf %22 : vector<16x256xf32> to vector<16x256xbf16>
    %c0_9 = arith.constant 0 : index
    %c0_10 = arith.constant 0 : index
    %24 = vector.load %arg4[%c0_9, %c0_10] : memref<256x768xbf16, #tpu.memory_space<vmem>>, vector<256x768xbf16>
    %cst_11 = arith.constant dense<0.000000e+00> : vector<16x768xf32>
    %25 = tpu.matmul %23, %24, %cst_11 {dimension_numbers = #tpu.dot_dimension_numbers<[1], [0], [0], [1], [0, 0, 1, 1], [], []>} : vector<16x256xbf16>, vector<256x768xbf16>, vector<16x768xf32> -> vector<16x768xf32>
    %c0_12 = arith.constant 0 : index
    %c0_13 = arith.constant 0 : index
    %26 = vector.load %arg5[%c0_12, %c0_13] : memref<1x768xf32, #tpu.memory_space<vmem>>, vector<1x768xf32>
    %27 = vector.broadcast %26 : vector<1x768xf32> to vector<16x768xf32>
    %28 = arith.addf %25, %27 : vector<16x768xf32>
    %29 = arith.truncf %28 : vector<16x768xf32> to vector<16x768xbf16>
    %c0_14 = arith.constant 0 : index
    %c0_15 = arith.constant 0 : index
    %30 = vector.load %arg6[%c0_14, %c0_15] : memref<16x768xbf16, #tpu.memory_space<vmem>>, vector<16x768xbf16>
    tpu.vector_store %arg6[%c0_14, %c0_15], %29 {strides = array<i32>} : memref<16x768xbf16, #tpu.memory_space<vmem>>, vector<16x768xbf16>,
    return
  }
  func.func @transform_0(%arg0: i32) -> (i32, i32) {
    %c0_i32 = arith.constant 0 : i32
    %c0_i32_0 = arith.constant 0 : i32
    return %arg0, %c0_i32 : i32, i32
  }
  func.func @transform_1(%arg0: i32) -> (i32, i32) {
    %c0_i32 = arith.constant 0 : i32
    %c0_i32_0 = arith.constant 0 : i32
    %c0_i32_1 = arith.constant 0 : i32
    return %c0_i32, %c0_i32_0 : i32, i32
  }
  func.func @transform_2(%arg0: i32) -> (i32, i32) {
    %c0_i32 = arith.constant 0 : i32
    %c0_i32_0 = arith.constant 0 : i32
    %c0_i32_1 = arith.constant 0 : i32
    return %c0_i32, %c0_i32_0 : i32, i32
  }
  func.func @transform_3(%arg0: i32) -> (i32, i32) {
    %c0_i32 = arith.constant 0 : i32
    %c0_i32_0 = arith.constant 0 : i32
    %c0_i32_1 = arith.constant 0 : i32
    return %c0_i32, %c0_i32_0 : i32, i32
  }
  func.func @transform_4(%arg0: i32) -> (i32, i32) {
    %c0_i32 = arith.constant 0 : i32
    %c0_i32_0 = arith.constant 0 : i32
    %c0_i32_1 = arith.constant 0 : i32
    return %c0_i32, %c0_i32_0 : i32, i32
  }
  func.func @transform_5(%arg0: i32) -> (i32, i32) {
    %c0_i32 = arith.constant 0 : i32
    %c0_i32_0 = arith.constant 0 : i32
    return %arg0, %c0_i32 : i32, i32
  }
}

module attributes {stable_mosaic.version = 11 : i64} {
  func.func @_linear_residual_kernel(%arg0: i32, %arg1: memref<16x256xbf16, #tpu.memory_space<vmem>>, %arg2: memref<256x256xbf16, #tpu.memory_space<vmem>>, %arg3: memref<1x256xf32, #tpu.memory_space<vmem>>, %arg4: memref<16x256xf32, #tpu.memory_space<vmem>>, %arg5: memref<16x256xf32, #tpu.memory_space<vmem>>) attributes {dimension_semantics = [#tpu.dimension_semantics<parallel>], iteration_bounds = array<i64: 1>, scalar_prefetch = 0 : i64, scratch_operands = 0 : i64, tpu.core_type = #tpu.core_type<tc>, window_params = [{transform_indices = @transform_0, window_bounds = array<i64: 16, 256>}, {pipeline_mode = #tpu.pipeline_mode<synchronous>, transform_indices = @transform_1, window_bounds = array<i64: 256, 256>}, {pipeline_mode = #tpu.pipeline_mode<synchronous>, transform_indices = @transform_2, window_bounds = array<i64: 1, 256>}, {transform_indices = @transform_3, window_bounds = array<i64: 16, 256>}, {transform_indices = @transform_4, window_bounds = array<i64: 16, 256>}]} {
    %c0 = arith.constant 0 : index
    %c0_0 = arith.constant 0 : index
    %0 = vector.load %arg1[%c0, %c0_0] : memref<16x256xbf16, #tpu.memory_space<vmem>>, vector<16x256xbf16>
    %c0_1 = arith.constant 0 : index
    %c0_2 = arith.constant 0 : index
    %1 = vector.load %arg2[%c0_1, %c0_2] : memref<256x256xbf16, #tpu.memory_space<vmem>>, vector<256x256xbf16>
    %cst = arith.constant dense<0.000000e+00> : vector<16x256xf32>
    %2 = tpu.matmul %0, %1, %cst {dimension_numbers = #tpu.dot_dimension_numbers<[1], [0], [0], [1], [0, 0, 1, 1], [], []>} : vector<16x256xbf16>, vector<256x256xbf16>, vector<16x256xf32> -> vector<16x256xf32>
    %c0_3 = arith.constant 0 : index
    %c0_4 = arith.constant 0 : index
    %3 = vector.load %arg3[%c0_3, %c0_4] : memref<1x256xf32, #tpu.memory_space<vmem>>, vector<1x256xf32>
    %4 = vector.broadcast %3 : vector<1x256xf32> to vector<16x256xf32>
    %5 = arith.addf %2, %4 : vector<16x256xf32>
    %c0_5 = arith.constant 0 : index
    %c0_6 = arith.constant 0 : index
    %6 = vector.load %arg4[%c0_5, %c0_6] : memref<16x256xf32, #tpu.memory_space<vmem>>, vector<16x256xf32>
    %7 = arith.addf %5, %6 : vector<16x256xf32>
    %c0_7 = arith.constant 0 : index
    %c0_8 = arith.constant 0 : index
    %8 = vector.load %arg5[%c0_7, %c0_8] : memref<16x256xf32, #tpu.memory_space<vmem>>, vector<16x256xf32>
    tpu.vector_store %arg5[%c0_7, %c0_8], %7 {strides = array<i32>} : memref<16x256xf32, #tpu.memory_space<vmem>>, vector<16x256xf32>,
    return
  }
  func.func @transform_0(%arg0: i32) -> (i32, i32) {
    %c0_i32 = arith.constant 0 : i32
    %c0_i32_0 = arith.constant 0 : i32
    return %arg0, %c0_i32 : i32, i32
  }
  func.func @transform_1(%arg0: i32) -> (i32, i32) {
    %c0_i32 = arith.constant 0 : i32
    %c0_i32_0 = arith.constant 0 : i32
    %c0_i32_1 = arith.constant 0 : i32
    return %c0_i32, %c0_i32_0 : i32, i32
  }
  func.func @transform_2(%arg0: i32) -> (i32, i32) {
    %c0_i32 = arith.constant 0 : i32
    %c0_i32_0 = arith.constant 0 : i32
    %c0_i32_1 = arith.constant 0 : i32
    return %c0_i32, %c0_i32_0 : i32, i32
  }
  func.func @transform_3(%arg0: i32) -> (i32, i32) {
    %c0_i32 = arith.constant 0 : i32
    %c0_i32_0 = arith.constant 0 : i32
    return %arg0, %c0_i32 : i32, i32
  }
  func.func @transform_4(%arg0: i32) -> (i32, i32) {
    %c0_i32 = arith.constant 0 : i32
    %c0_i32_0 = arith.constant 0 : i32
    return %arg0, %c0_i32 : i32, i32
  }
}

module attributes {stable_mosaic.version = 11 : i64} {
  func.func @_ln_linear_kernel(%arg0: i32, %arg1: memref<16x256xf32, #tpu.memory_space<vmem>>, %arg2: memref<1x256xf32, #tpu.memory_space<vmem>>, %arg3: memref<1x256xf32, #tpu.memory_space<vmem>>, %arg4: memref<256x512xbf16, #tpu.memory_space<vmem>>, %arg5: memref<1x512xf32, #tpu.memory_space<vmem>>, %arg6: memref<16x512xbf16, #tpu.memory_space<vmem>>) attributes {dimension_semantics = [#tpu.dimension_semantics<parallel>], iteration_bounds = array<i64: 1>, scalar_prefetch = 0 : i64, scratch_operands = 0 : i64, tpu.core_type = #tpu.core_type<tc>, window_params = [{transform_indices = @transform_0, window_bounds = array<i64: 16, 256>}, {pipeline_mode = #tpu.pipeline_mode<synchronous>, transform_indices = @transform_1, window_bounds = array<i64: 1, 256>}, {pipeline_mode = #tpu.pipeline_mode<synchronous>, transform_indices = @transform_2, window_bounds = array<i64: 1, 256>}, {pipeline_mode = #tpu.pipeline_mode<synchronous>, transform_indices = @transform_3, window_bounds = array<i64: 256, 512>}, {pipeline_mode = #tpu.pipeline_mode<synchronous>, transform_indices = @transform_4, window_bounds = array<i64: 1, 512>}, {transform_indices = @transform_5, window_bounds = array<i64: 16, 512>}]} {
    %c0 = arith.constant 0 : index
    %c0_0 = arith.constant 0 : index
    %0 = vector.load %arg1[%c0, %c0_0] : memref<16x256xf32, #tpu.memory_space<vmem>>, vector<16x256xf32>
    %cst = arith.constant dense<0.000000e+00> : vector<16xf32>
    %1 = vector.multi_reduction <add>, %0, %cst [1] : vector<16x256xf32> to vector<16xf32>
    %2 = vector.shape_cast %1 : vector<16xf32> to vector<16x1xf32>
    %cst_1 = arith.constant 2.560000e+02 : f32
    %3 = vector.broadcast %cst_1 : f32 to vector<16x1xf32>
    %4 = arith.divf %2, %3 : vector<16x1xf32>
    %5 = vector.broadcast %4 : vector<16x1xf32> to vector<16x256xf32>
    %6 = arith.subf %0, %5 : vector<16x256xf32>
    %7 = arith.mulf %6, %6 : vector<16x256xf32>
    %cst_2 = arith.constant dense<0.000000e+00> : vector<16xf32>
    %8 = vector.multi_reduction <add>, %7, %cst_2 [1] : vector<16x256xf32> to vector<16xf32>
    %9 = vector.shape_cast %8 : vector<16xf32> to vector<16x1xf32>
    %cst_3 = arith.constant 2.560000e+02 : f32
    %10 = vector.broadcast %cst_3 : f32 to vector<16x1xf32>
    %11 = arith.divf %9, %10 : vector<16x1xf32>
    %cst_4 = arith.constant 9.99999974E-6 : f32
    %12 = vector.broadcast %cst_4 : f32 to vector<16x1xf32>
    %13 = arith.addf %11, %12 : vector<16x1xf32>
    %14 = math.rsqrt %13 : vector<16x1xf32>
    %15 = vector.broadcast %14 : vector<16x1xf32> to vector<16x256xf32>
    %16 = arith.mulf %6, %15 : vector<16x256xf32>
    %c0_5 = arith.constant 0 : index
    %c0_6 = arith.constant 0 : index
    %17 = vector.load %arg2[%c0_5, %c0_6] : memref<1x256xf32, #tpu.memory_space<vmem>>, vector<1x256xf32>
    %18 = vector.broadcast %17 : vector<1x256xf32> to vector<16x256xf32>
    %19 = arith.mulf %16, %18 : vector<16x256xf32>
    %c0_7 = arith.constant 0 : index
    %c0_8 = arith.constant 0 : index
    %20 = vector.load %arg3[%c0_7, %c0_8] : memref<1x256xf32, #tpu.memory_space<vmem>>, vector<1x256xf32>
    %21 = vector.broadcast %20 : vector<1x256xf32> to vector<16x256xf32>
    %22 = arith.addf %19, %21 : vector<16x256xf32>
    %23 = arith.truncf %22 : vector<16x256xf32> to vector<16x256xbf16>
    %c0_9 = arith.constant 0 : index
    %c0_10 = arith.constant 0 : index
    %24 = vector.load %arg4[%c0_9, %c0_10] : memref<256x512xbf16, #tpu.memory_space<vmem>>, vector<256x512xbf16>
    %cst_11 = arith.constant dense<0.000000e+00> : vector<16x512xf32>
    %25 = tpu.matmul %23, %24, %cst_11 {dimension_numbers = #tpu.dot_dimension_numbers<[1], [0], [0], [1], [0, 0, 1, 1], [], []>} : vector<16x256xbf16>, vector<256x512xbf16>, vector<16x512xf32> -> vector<16x512xf32>
    %c0_12 = arith.constant 0 : index
    %c0_13 = arith.constant 0 : index
    %26 = vector.load %arg5[%c0_12, %c0_13] : memref<1x512xf32, #tpu.memory_space<vmem>>, vector<1x512xf32>
    %27 = vector.broadcast %26 : vector<1x512xf32> to vector<16x512xf32>
    %28 = arith.addf %25, %27 : vector<16x512xf32>
    %cst_14 = arith.constant 5.000000e-01 : f32
    %29 = vector.broadcast %cst_14 : f32 to vector<16x512xf32>
    %30 = arith.mulf %29, %28 : vector<16x512xf32>
    %cst_15 = arith.constant 4.471500e-02 : f32
    %31 = vector.broadcast %cst_15 : f32 to vector<16x512xf32>
    %32 = arith.mulf %31, %28 : vector<16x512xf32>
    %33 = arith.mulf %32, %28 : vector<16x512xf32>
    %34 = arith.mulf %33, %28 : vector<16x512xf32>
    %35 = arith.addf %28, %34 : vector<16x512xf32>
    %cst_16 = arith.constant 0.797884583 : f32
    %36 = vector.broadcast %cst_16 : f32 to vector<16x512xf32>
    %37 = arith.mulf %36, %35 : vector<16x512xf32>
    %38 = math.tanh %37 : vector<16x512xf32>
    %cst_17 = arith.constant 1.000000e+00 : f32
    %39 = vector.broadcast %cst_17 : f32 to vector<16x512xf32>
    %40 = arith.addf %39, %38 : vector<16x512xf32>
    %41 = arith.mulf %30, %40 : vector<16x512xf32>
    %42 = arith.truncf %41 : vector<16x512xf32> to vector<16x512xbf16>
    %c0_18 = arith.constant 0 : index
    %c0_19 = arith.constant 0 : index
    %43 = vector.load %arg6[%c0_18, %c0_19] : memref<16x512xbf16, #tpu.memory_space<vmem>>, vector<16x512xbf16>
    tpu.vector_store %arg6[%c0_18, %c0_19], %42 {strides = array<i32>} : memref<16x512xbf16, #tpu.memory_space<vmem>>, vector<16x512xbf16>,
    return
  }
  func.func @transform_0(%arg0: i32) -> (i32, i32) {
    %c0_i32 = arith.constant 0 : i32
    %c0_i32_0 = arith.constant 0 : i32
    return %arg0, %c0_i32 : i32, i32
  }
  func.func @transform_1(%arg0: i32) -> (i32, i32) {
    %c0_i32 = arith.constant 0 : i32
    %c0_i32_0 = arith.constant 0 : i32
    %c0_i32_1 = arith.constant 0 : i32
    return %c0_i32, %c0_i32_0 : i32, i32
  }
  func.func @transform_2(%arg0: i32) -> (i32, i32) {
    %c0_i32 = arith.constant 0 : i32
    %c0_i32_0 = arith.constant 0 : i32
    %c0_i32_1 = arith.constant 0 : i32
    return %c0_i32, %c0_i32_0 : i32, i32
  }
  func.func @transform_3(%arg0: i32) -> (i32, i32) {
    %c0_i32 = arith.constant 0 : i32
    %c0_i32_0 = arith.constant 0 : i32
    %c0_i32_1 = arith.constant 0 : i32
    return %c0_i32, %c0_i32_0 : i32, i32
  }
  func.func @transform_4(%arg0: i32) -> (i32, i32) {
    %c0_i32 = arith.constant 0 : i32
    %c0_i32_0 = arith.constant 0 : i32
    %c0_i32_1 = arith.constant 0 : i32
    return %c0_i32, %c0_i32_0 : i32, i32
  }
  func.func @transform_5(%arg0: i32) -> (i32, i32) {
    %c0_i32 = arith.constant 0 : i32
    %c0_i32_0 = arith.constant 0 : i32
    return %arg0, %c0_i32 : i32, i32
  }
}

module attributes {stable_mosaic.version = 11 : i64} {
  func.func @_linear_residual_kernel(%arg0: i32, %arg1: memref<16x512xbf16, #tpu.memory_space<vmem>>, %arg2: memref<512x256xbf16, #tpu.memory_space<vmem>>, %arg3: memref<1x256xf32, #tpu.memory_space<vmem>>, %arg4: memref<16x256xf32, #tpu.memory_space<vmem>>, %arg5: memref<16x256xf32, #tpu.memory_space<vmem>>) attributes {dimension_semantics = [#tpu.dimension_semantics<parallel>], iteration_bounds = array<i64: 1>, scalar_prefetch = 0 : i64, scratch_operands = 0 : i64, tpu.core_type = #tpu.core_type<tc>, window_params = [{transform_indices = @transform_0, window_bounds = array<i64: 16, 512>}, {pipeline_mode = #tpu.pipeline_mode<synchronous>, transform_indices = @transform_1, window_bounds = array<i64: 512, 256>}, {pipeline_mode = #tpu.pipeline_mode<synchronous>, transform_indices = @transform_2, window_bounds = array<i64: 1, 256>}, {transform_indices = @transform_3, window_bounds = array<i64: 16, 256>}, {transform_indices = @transform_4, window_bounds = array<i64: 16, 256>}]} {
    %c0 = arith.constant 0 : index
    %c0_0 = arith.constant 0 : index
    %0 = vector.load %arg1[%c0, %c0_0] : memref<16x512xbf16, #tpu.memory_space<vmem>>, vector<16x512xbf16>
    %c0_1 = arith.constant 0 : index
    %c0_2 = arith.constant 0 : index
    %1 = vector.load %arg2[%c0_1, %c0_2] : memref<512x256xbf16, #tpu.memory_space<vmem>>, vector<512x256xbf16>
    %cst = arith.constant dense<0.000000e+00> : vector<16x256xf32>
    %2 = tpu.matmul %0, %1, %cst {dimension_numbers = #tpu.dot_dimension_numbers<[1], [0], [0], [1], [0, 0, 1, 1], [], []>} : vector<16x512xbf16>, vector<512x256xbf16>, vector<16x256xf32> -> vector<16x256xf32>
    %c0_3 = arith.constant 0 : index
    %c0_4 = arith.constant 0 : index
    %3 = vector.load %arg3[%c0_3, %c0_4] : memref<1x256xf32, #tpu.memory_space<vmem>>, vector<1x256xf32>
    %4 = vector.broadcast %3 : vector<1x256xf32> to vector<16x256xf32>
    %5 = arith.addf %2, %4 : vector<16x256xf32>
    %c0_5 = arith.constant 0 : index
    %c0_6 = arith.constant 0 : index
    %6 = vector.load %arg4[%c0_5, %c0_6] : memref<16x256xf32, #tpu.memory_space<vmem>>, vector<16x256xf32>
    %7 = arith.addf %5, %6 : vector<16x256xf32>
    %c0_7 = arith.constant 0 : index
    %c0_8 = arith.constant 0 : index
    %8 = vector.load %arg5[%c0_7, %c0_8] : memref<16x256xf32, #tpu.memory_space<vmem>>, vector<16x256xf32>
    tpu.vector_store %arg5[%c0_7, %c0_8], %7 {strides = array<i32>} : memref<16x256xf32, #tpu.memory_space<vmem>>, vector<16x256xf32>,
    return
  }
  func.func @transform_0(%arg0: i32) -> (i32, i32) {
    %c0_i32 = arith.constant 0 : i32
    %c0_i32_0 = arith.constant 0 : i32
    return %arg0, %c0_i32 : i32, i32
  }
  func.func @transform_1(%arg0: i32) -> (i32, i32) {
    %c0_i32 = arith.constant 0 : i32
    %c0_i32_0 = arith.constant 0 : i32
    %c0_i32_1 = arith.constant 0 : i32
    return %c0_i32, %c0_i32_0 : i32, i32
  }
  func.func @transform_2(%arg0: i32) -> (i32, i32) {
    %c0_i32 = arith.constant 0 : i32
    %c0_i32_0 = arith.constant 0 : i32
    %c0_i32_1 = arith.constant 0 : i32
    return %c0_i32, %c0_i32_0 : i32, i32
  }
  func.func @transform_3(%arg0: i32) -> (i32, i32) {
    %c0_i32 = arith.constant 0 : i32
    %c0_i32_0 = arith.constant 0 : i32
    return %arg0, %c0_i32 : i32, i32
  }
  func.func @transform_4(%arg0: i32) -> (i32, i32) {
    %c0_i32 = arith.constant 0 : i32
    %c0_i32_0 = arith.constant 0 : i32
    return %arg0, %c0_i32 : i32, i32
  }
}

</mosaic_0001>

<llo_original>
// kernel: transformer_encoder.7
$region0: #{transformer_encoder.7}
  #allocation0 [shape = 'u32[]', space=smem, size = 0x4, offset = 0x4, fixed_abs, tag = 'smem constant byte address 0x4 - core index']
  #allocation1 [shape = 'u32[144,128]{1,0:T(1,128)}', space=vmem, size = 0x12000, scoped, tag = 'internal scratch']
  %s0 = inlined_call_operand.vmem [shape: bf16[16,256], index: 0, kind: input, shape index: {}]
  %s1 = inlined_call_operand.vmem [shape: bf16[256,256], index: 1, kind: input, shape index: {}]
  %s2 = inlined_call_operand.vmem [shape: f32[1,256], index: 2, kind: input, shape index: {}]
  %s3 = inlined_call_operand.vmem [shape: f32[16,256], index: 3, kind: input, shape index: {}]
  %s4 = inlined_call_operand.vmem [shape: f32[16,256], index: 4, kind: output, shape index: {}]
  %s5 = sld [smem:[#allocation0]]
  $region26: #{transformer_encoder.7} parent=0
    _
  %s7 = ssub.s32 1, %s5
  %s8 = scalar_select 0, %s7, %s5
  // Predicated region
  $region2: #{transformer_encoder.7} parent=0 // pred_check
    _
  $region3: #{transformer_encoder.7} parent=0 // pred_check_branch
    %10 = sbr.rel (0) target = $region5
  $region4: #{transformer_encoder.7} parent=0 // pred_region
    _
  $region5: #{transformer_encoder.7} parent=0 // pred_fallthru
    _
  // Predicated region
  $region6: #{transformer_encoder.7} parent=0 // pred_check
    _
  $region7: #{transformer_encoder.7} parent=0 // pred_check_branch
    %12 = sbr.rel (0) target = $region9
  $region8: #{transformer_encoder.7} parent=0 // pred_region
    _
  $region9: #{transformer_encoder.7} parent=0 // pred_fallthru
    _
  // Predicated region
  $region10: #{transformer_encoder.7} parent=0 // pred_check
    _
  $region11: #{transformer_encoder.7} parent=0 // pred_check_branch
    %14 = sbr.rel (0) target = $region13
  $region12: #{transformer_encoder.7} parent=0 // pred_region
    _
  $region13: #{transformer_encoder.7} parent=0 // pred_fallthru
    _
  // Predicated region
  $region14: #{transformer_encoder.7} parent=0 // pred_check
    _
  $region15: #{transformer_encoder.7} parent=0 // pred_check_branch
    %16 = sbr.rel (0) target = $region17
  $region16: #{transformer_encoder.7} parent=0 // pred_region
    _
  $region17: #{transformer_encoder.7} parent=0 // pred_fallthru
    _
  %v17 = vld [vmem:[%s0] sm:$0xff]
  %v18 = vld [vmem:[%s0 + $0x8] sm:$0xff]
  %v19 = vld [vmem:[%s1] sm:$0xff]
  %v20 = vld [vmem:[%s1 + $0x8] sm:$0xff]
  %v21 = vld [vmem:[%s1 + $0x10] sm:$0xff]
  %v22 = vld [vmem:[%s1 + $0x18] sm:$0xff]
  %v23 = vld [vmem:[%s1 + $0x20] sm:$0xff]
  %v24 = vld [vmem:[%s1 + $0x28] sm:$0xff]
  %v25 = vld [vmem:[%s1 + $0x30] sm:$0xff]
  %v26 = vld [vmem:[%s1 + $0x38] sm:$0xff]
  %v27 = vld [vmem:[%s1 + $0x40] sm:$0xff]
  %v28 = vld [vmem:[%s1 + $0x48] sm:$0xff]
  %v29 = vld [vmem:[%s1 + $0x50] sm:$0xff]
  %v30 = vld [vmem:[%s1 + $0x58] sm:$0xff]
  %v31 = vld [vmem:[%s1 + $0x60] sm:$0xff]
  %v32 = vld [vmem:[%s1 + $0x68] sm:$0xff]
  %v33 = vld [vmem:[%s1 + $0x70] sm:$0xff]
  %v34 = vld [vmem:[%s1 + $0x78] sm:$0xff]
  %v35 = vld [vmem:[%s1 + $0x80] sm:$0xff]
  %v36 = vld [vmem:[%s1 + $0x88] sm:$0xff]
  %v37 = vld [vmem:[%s1 + $0x90] sm:$0xff]
  %v38 = vld [vmem:[%s1 + $0x98] sm:$0xff]
  %v39 = vld [vmem:[%s1 + $0xa0] sm:$0xff]
  %v40 = vld [vmem:[%s1 + $0xa8] sm:$0xff]
  %v41 = vld [vmem:[%s1 + $0xb0] sm:$0xff]
  %v42 = vld [vmem:[%s1 + $0xb8] sm:$0xff]
  %v43 = vld [vmem:[%s1 + $0xc0] sm:$0xff]
  %v44 = vld [vmem:[%s1 + $0xc8] sm:$0xff]
  %v45 = vld [vmem:[%s1 + $0xd0] sm:$0xff]
  %v46 = vld [vmem:[%s1 + $0xd8] sm:$0xff]
  %v47 = vld [vmem:[%s1 + $0xe0] sm:$0xff]
  %v48 = vld [vmem:[%s1 + $0xe8] sm:$0xff]
  %v49 = vld [vmem:[%s1 + $0xf0] sm:$0xff]
  %v50 = vld [vmem:[%s1 + $0xf8] sm:$0xff]
  %v51 = vld [vmem:[%s2] sm:$0x3]
  %v53 = vlaneseq
  %v54 = vshrl.u32 %v53, 7
  %v55 = vsub.s32 0, %v54
  %v56 = vrot.slane %v51, %v55
  %v57 = vlaneseq
  %v58 = vshrl.u32 %v57, 7
  %v59 = vsub.s32 1, %v58
  %v60 = vrot.slane %v51, %v59
  %v65 = vunpack.c.l.b16 %v17
  %v66 = vunpack.c.h.b16 %v17
  %v67 = vunpack.c.l.b16 %v18
  %v68 = vunpack.c.h.b16 %v18
  %v69 = vpack.c.b16 %v67, %v65
  %v70 = vpack.c.b16 %v68, %v66
  %v105 = vunpack.c.l.b16 %v19
  %v106 = vunpack.c.h.b16 %v19
  %v107 = vunpack.c.l.b16 %v20
  %v108 = vunpack.c.h.b16 %v20
  %v109 = vunpack.c.l.b16 %v21
  %v110 = vunpack.c.h.b16 %v21
  %v111 = vunpack.c.l.b16 %v22
  %v112 = vunpack.c.h.b16 %v22
  %v113 = vunpack.c.l.b16 %v23
  %v114 = vunpack.c.h.b16 %v23
  %v115 = vunpack.c.l.b16 %v24
  %v116 = vunpack.c.h.b16 %v24
  %v117 = vunpack.c.l.b16 %v25
  %v118 = vunpack.c.h.b16 %v25
  %v119 = vunpack.c.l.b16 %v26
  %v120 = vunpack.c.h.b16 %v26
  %v121 = vunpack.c.l.b16 %v27
  %v122 = vunpack.c.h.b16 %v27
  %v123 = vunpack.c.l.b16 %v28
  %v124 = vunpack.c.h.b16 %v28
  %v125 = vunpack.c.l.b16 %v29
  %v126 = vunpack.c.h.b16 %v29
  %v127 = vunpack.c.l.b16 %v30
  %v128 = vunpack.c.h.b16 %v30
  %v129 = vunpack.c.l.b16 %v31
  %v130 = vunpack.c.h.b16 %v31
  %v131 = vunpack.c.l.b16 %v32
  %v132 = vunpack.c.h.b16 %v32
  %v133 = vunpack.c.l.b16 %v33
  %v134 = vunpack.c.h.b16 %v33
  %v135 = vunpack.c.l.b16 %v34
  %v136 = vunpack.c.h.b16 %v34
  %v137 = vunpack.c.l.b16 %v35
  %v138 = vunpack.c.h.b16 %v35
  %v139 = vunpack.c.l.b16 %v36
  %v140 = vunpack.c.h.b16 %v36
  %v141 = vunpack.c.l.b16 %v37
  %v142 = vunpack.c.h.b16 %v37
  %v143 = vunpack.c.l.b16 %v38
  %v144 = vunpack.c.h.b16 %v38
  %v145 = vunpack.c.l.b16 %v39
  %v146 = vunpack.c.h.b16 %v39
  %v147 = vunpack.c.l.b16 %v40
  %v148 = vunpack.c.h.b16 %v40
  %v149 = vunpack.c.l.b16 %v41
  %v150 = vunpack.c.h.b16 %v41
  %v151 = vunpack.c.l.b16 %v42
  %v152 = vunpack.c.h.b16 %v42
  %v153 = vunpack.c.l.b16 %v43
  %v154 = vunpack.c.h.b16 %v43
  %v155 = vunpack.c.l.b16 %v44
  %v156 = vunpack.c.h.b16 %v44
  %v157 = vunpack.c.l.b16 %v45
  %v158 = vunpack.c.h.b16 %v45
  %v159 = vunpack.c.l.b16 %v46
  %v160 = vunpack.c.h.b16 %v46
  %v161 = vunpack.c.l.b16 %v47
  %v162 = vunpack.c.h.b16 %v47
  %v163 = vunpack.c.l.b16 %v48
  %v164 = vunpack.c.h.b16 %v48
  %v165 = vunpack.c.l.b16 %v49
  %v166 = vunpack.c.h.b16 %v49
  %v167 = vunpack.c.l.b16 %v50
  %v168 = vunpack.c.h.b16 %v50
  %v169 = vpack.c.b16 %v107, %v105
  %v170 = vpack.c.b16 %v108, %v106
  %v171 = vpack.c.b16 %v111, %v109
  %v172 = vpack.c.b16 %v112, %v110
  %v173 = vpack.c.b16 %v115, %v113
  %v174 = vpack.c.b16 %v116, %v114
  %v175 = vpack.c.b16 %v119, %v117
  %v176 = vpack.c.b16 %v120, %v118
  %v177 = vpack.c.b16 %v123, %v121
  %v178 = vpack.c.b16 %v124, %v122
  %v179 = vpack.c.b16 %v127, %v125
  %v180 = vpack.c.b16 %v128, %v126
  %v181 = vpack.c.b16 %v131, %v129
  %v182 = vpack.c.b16 %v132, %v130
  %v183 = vpack.c.b16 %v135, %v133
  %v184 = vpack.c.b16 %v136, %v134
  %v185 = vpack.c.b16 %v139, %v137
  %v186 = vpack.c.b16 %v140, %v138
  %v187 = vpack.c.b16 %v143, %v141
  %v188 = vpack.c.b16 %v144, %v142
  %v189 = vpack.c.b16 %v147, %v145
  %v190 = vpack.c.b16 %v148, %v146
  %v191 = vpack.c.b16 %v151, %v149
  %v192 = vpack.c.b16 %v152, %v150
  %v193 = vpack.c.b16 %v155, %v153
  %v194 = vpack.c.b16 %v156, %v154
  %v195 = vpack.c.b16 %v159, %v157
  %v196 = vpack.c.b16 %v160, %v158
  %v197 = vpack.c.b16 %v163, %v161
  %v198 = vpack.c.b16 %v164, %v162
  %v199 = vpack.c.b16 %v167, %v165
  %v200 = vpack.c.b16 %v168, %v166
  %233 = vmatprep.subr.bf16.mxu0 %v170
  %234 = vmatpush1.bf16.msra.mxu0 %v169
  %235 = vmatprep.subr.bf16.mxu0 %v172
  %236 = vmatpush1.bf16.msra.mxu0 %v171
  %237 = vmatprep.subr.bf16.mxu0 %v174
  %238 = vmatpush1.bf16.msra.mxu0 %v173
  %239 = vmatprep.subr.bf16.mxu0 %v176
  %240 = vmatpush1.bf16.msra.mxu0 %v175
  %241 = vmatprep.subr.bf16.mxu0 %v178
  %242 = vmatpush1.bf16.msra.mxu0 %v177
  %243 = vmatprep.subr.bf16.mxu0 %v180
  %244 = vmatpush1.bf16.msra.mxu0 %v179
  %245 = vmatprep.subr.bf16.mxu0 %v182
  %246 = vmatpush1.bf16.msra.mxu0 %v181
  %247 = vmatprep.subr.bf16.mxu0 %v184
  %248 = vmatpush1.bf16.msra.mxu0 %v183
  %249 = vmatprep.subr.bf16.mxu0 %v186
  %250 = vmatpush1.bf16.msra.mxu0 %v185
  %251 = vmatprep.subr.bf16.mxu0 %v188
  %252 = vmatpush1.bf16.msra.mxu0 %v187
  %253 = vmatprep.subr.bf16.mxu0 %v190
  %254 = vmatpush1.bf16.msra.mxu0 %v189
  %255 = vmatprep.subr.bf16.mxu0 %v192
  %256 = vmatpush1.bf16.msra.mxu0 %v191
  %257 = vmatprep.subr.bf16.mxu0 %v194
  %258 = vmatpush1.bf16.msra.mxu0 %v193
  %259 = vmatprep.subr.bf16.mxu0 %v196
  %260 = vmatpush1.bf16.msra.mxu0 %v195
  %261 = vmatprep.subr.bf16.mxu0 %v198
  %262 = vmatpush1.bf16.msra.mxu0 %v197
  %263 = vmatprep.subr.bf16.mxu0 %v200
  %264 = vmatpush1.bf16.msra.mxu0 %v199
  %265 = vmatprep.mubr.bf16.mxu0 %v70
  %266 = vmatmul.mubr.bf16.gmra.mrb[0].mxu0 %v69
  %v267 = vpop.f32.mrb[0].mxu0
  %v268 = vadd.f32 %v56, %v267
  %v269 = vpop.f32.mrb[0].mxu0
  %v270 = vadd.f32 %v60, %v269
  %v271 = vpop.f32.mrb[0].mxu0
  %v272 = vadd.f32 %v56, %v271
  %v273 = vpop.f32.mrb[0].mxu0
  %v274 = vadd.f32 %v60, %v273
  %275 = vdwg.mxu0
  %v276 = vld [vmem:[%s3] sm:$0xff]
  %v277 = vld [vmem:[%s3 + $0x8] sm:$0xff]
  %v278 = vld [vmem:[%s3 + $0x10] sm:$0xff]
  %v279 = vld [vmem:[%s3 + $0x18] sm:$0xff]
  %v280 = vadd.f32 %v268, %v276
  %v281 = vadd.f32 %v270, %v277
  %v282 = vadd.f32 %v272, %v278
  %v283 = vadd.f32 %v274, %v279
  %284 = vst [vmem:[%s4] sm:$0xff] %v280
  %285 = vst [vmem:[%s4 + $0x8] sm:$0xff] %v281
  %286 = vst [vmem:[%s4 + $0x10] sm:$0xff] %v282
  %287 = vst [vmem:[%s4 + $0x18] sm:$0xff] %v283
  // Predicated region
  $region18: #{transformer_encoder.7} parent=0 // pred_check
    _
  $region19: #{transformer_encoder.7} parent=0 // pred_check_branch
    %289 = sbr.rel (0) target = $region21
  $region20: #{transformer_encoder.7} parent=0 // pred_region
    _
  $region21: #{transformer_encoder.7} parent=0 // pred_fallthru
    _
  // Predicated region
  $region22: #{transformer_encoder.7} parent=0 // pred_check
    _
  $region23: #{transformer_encoder.7} parent=0 // pred_check_branch
    %291 = sbr.rel (0) target = $region25
  $region24: #{transformer_encoder.7} parent=0 // pred_region
    _
  $region25: #{transformer_encoder.7} parent=0 // pred_fallthru
    _

// kernel: transformer_encoder.6
$region0: #{transformer_encoder.6}
  #allocation0 [shape = 'u32[]', space=smem, size = 0x4, offset = 0x4, fixed_abs, tag = 'smem constant byte address 0x4 - core index']
  #allocation1 [shape = 'u32[144,128]{1,0:T(1,128)}', space=vmem, size = 0x12000, scoped, tag = 'internal scratch']
  %s0 = inlined_call_operand.vmem [shape: bf16[2,8,768], index: 0, kind: input, shape index: {}]
  %s1 = inlined_call_operand.vmem [shape: bf16[2,8,256], index: 1, kind: output, shape index: {}]
  %s2 = sld [smem:[#allocation0]]
  $region37: #{transformer_encoder.6} parent=0
    _
  %s4 = ssub.s32 1, %s2
  %s5 = scalar_select 0, %s4, %s2
  loop: start=0, step=1, limit=6
  $region2: #{transformer_encoder.6} parent=0 // loop_pre_header
    _
  $region3: #{transformer_encoder.6} parent=0 // loop_header
    %s7 = sphi 0, %s11
    %p8 = scmp.ge.s32.totalorder %s7, 6
    %s14 = sphi 0, %s26
    %s15 = sphi 0, %s22
    %s16 = sphi 0, %s14
    %s17 = sphi 0, %s15
    %s18 = sphi 0, %s16
    %s19 = sphi 0, %s17
    %s31 = sphi 0, %s33
    %s34 = sphi 0, %s31
    %s35 = sphi 0, %s34
    %s51 = sphi 0, %s35
    %s59 = sphi 0, %s61
    %s62 = sphi 0, %s59
    %s63 = sphi 0, %s62
    %s79 = sphi 0, %s63
  $region4: #{transformer_encoder.6} parent=0 // loop_header_branch
    %10 = sbr.rel (%p8) target = $region8
  $region5: #{transformer_encoder.6} parent=0 // loop_body
    %s12 = ssub.s32 %s7, 1
    %s13 = ssub.s32 %s7, 2
    %s20 = sadd.s32 1, %s15
    %p21 = scmp.ge.s32.totalorder %s20, 2
    %s22 = scalar_select %p21, 0, %s20
    %s23 = sadd.s32 1, %s14
    %s24 = scalar_select %p21, %s23, %s14
    %p25 = scmp.ge.s32.totalorder %s24, 2
    %s26 = scalar_select %p25, 0, %s24
    %s27 = ssub.s32 %s14, %s26
    %s28 = ssub.s32 %s15, %s22
    %s29 = sor.u32 %s27, %s28
    %p30 = scmp.eq.s32.totalorder %s29, 0
    %s32 = sadd.s32 %s31, 1
    %s33 = scalar_select %p30, %s31, %s32
    %p36 = pneg %p30
    %p37 = scmp.eq.s32.totalorder %s7, 3
    %p38 = por %p36, %p37
    %p39 = scmp.ne.s32.totalorder %s31, %s34
    %p40 = scmp.eq.s32.totalorder %s7, 0
    %p41 = por %p39, %p40
    %p42 = scmp.ne.s32.totalorder %s31, %s34
    %p43 = scmp.eq.s32.totalorder %s12, 3
    %p44 = por %p42, %p43
    %p45 = scmp.ne.s32.totalorder %s34, %s35
    %p46 = scmp.eq.s32.totalorder %s12, 0
    %p47 = por %p45, %p46
    %p48 = scmp.ne.s32.totalorder %s34, %s35
    %p49 = scmp.eq.s32.totalorder %s13, 3
    %p50 = por %p48, %p49
    %p52 = scmp.ne.s32.totalorder %s35, %s51
    %p53 = scmp.eq.s32.totalorder %s13, 0
    %p54 = por %p52, %p53
    %s55 = ssub.s32 %s14, %s26
    %s56 = ssub.s32 %s15, %s22
    %s57 = sor.u32 %s55, %s56
    %p58 = scmp.eq.s32.totalorder %s57, 0
    %s60 = sadd.s32 %s59, 1
    %s61 = scalar_select %p58, %s59, %s60
    %p64 = pneg %p58
    %p65 = scmp.eq.s32.totalorder %s7, 3
    %p66 = por %p64, %p65
    %p67 = scmp.ne.s32.totalorder %s59, %s62
    %p68 = scmp.eq.s32.totalorder %s7, 0
    %p69 = por %p67, %p68
    %p70 = scmp.ne.s32.totalorder %s59, %s62
    %p71 = scmp.eq.s32.totalorder %s12, 3
    %p72 = por %p70, %p71
    %p73 = scmp.ne.s32.totalorder %s62, %s63
    %p74 = scmp.eq.s32.totalorder %s12, 0
    %p75 = por %p73, %p74
    %p76 = scmp.ne.s32.totalorder %s62, %s63
    %p77 = scmp.eq.s32.totalorder %s13, 3
    %p78 = por %p76, %p77
    %p80 = scmp.ne.s32.totalorder %s63, %s79
    %p81 = scmp.eq.s32.totalorder %s13, 0
    %p82 = por %p80, %p81
    %p83 = scmp.le.s32.totalorder 1, %s7
    %p84 = scmp.lt.s32.totalorder %s7, 5
    %p85 = pnand %p83, %p84
    %p86 = pneg %p85
    // Predicated region
    $region9: #{transformer_encoder.6} parent=5 // pred_check
      _
    $region10: #{transformer_encoder.6} parent=5 // pred_check_branch
      %88 = sbr.rel (%p85) target = $region12
    $region11: #{transformer_encoder.6} parent=5 // pred_region
      %s89 = ssub.s32 %s7, 1
    $region12: #{transformer_encoder.6} parent=5 // pred_fallthru
      _
    %p90 = scmp.lt.s32.totalorder %s7, 4
    // Predicated region
    $region13: #{transformer_encoder.6} parent=5 // pred_check
      %p91 = pneg %p90
    $region14: #{transformer_encoder.6} parent=5 // pred_check_branch
      %93 = sbr.rel (%p91) target = $region16
    $region15: #{transformer_encoder.6} parent=5 // pred_region
      // Predicated region
      $region17: #{transformer_encoder.6} parent=15 // pred_check
        %p94 = pneg %p41
      $region18: #{transformer_encoder.6} parent=15 // pred_check_branch
        %96 = sbr.rel (%p94) target = $region20
      $region19: #{transformer_encoder.6} parent=15 // pred_region
        %s97 = smul.u32 3, %s15
        %p98 = scmp.lt.s32.totalorder %s14, 1
        %s99 = scalar_select %p98, %s14, 1
        %p100 = scmp.lt.s32.totalorder %s97, 5
        %s101 = scalar_select %p100, %s97, 5
        %s102 = smul.addr %s99, 6
        %s103 = sadd.s32 %s101, %s102
        %s104 = smul.addr %s103, 4
        %s105 = scalar_lea.vmem %s0, %s104
        %s106 = smul.u32 3, %s15
      $region20: #{transformer_encoder.6} parent=15 // pred_fallthru
        _
    $region16: #{transformer_encoder.6} parent=5 // pred_fallthru
      _
    %p107 = scmp.le.s32.totalorder 1, %s7
    %p108 = scmp.lt.s32.totalorder %s7, 5
    %p109 = pnand %p107, %p108
    %p110 = pneg %p109
    // Predicated region
    $region21: #{transformer_encoder.6} parent=5 // pred_check
      _
    $region22: #{transformer_encoder.6} parent=5 // pred_check_branch
      %112 = sbr.rel (%p109) target = $region24
    $region23: #{transformer_encoder.6} parent=5 // pred_region
      %s113 = ssub.s32 %s7, 1
      %s114 = smul.u32 3, %s17
      %p115 = scmp.lt.s32.totalorder %s16, 1
      %s116 = scalar_select %p115, %s16, 1
      %p117 = scmp.lt.s32.totalorder %s114, 5
      %s118 = scalar_select %p117, %s114, 5
      %s119 = smul.addr %s116, 6
      %s120 = sadd.s32 %s118, %s119
      %s121 = smul.addr %s120, 4
      %s122 = scalar_lea.vmem %s0, %s121
      %p123 = pneg %p47
      %p124 = pneg %p44
      %p125 = pneg %p75
      %p126 = pneg %p72
      %p127 = scmp.lt.s32.totalorder %s16, 1
      %s128 = scalar_select %p127, %s16, 1
      %p129 = scmp.lt.s32.totalorder %s17, 1
      %s130 = scalar_select %p129, %s17, 1
      %s131 = smul.addr %s128, 2
      %s132 = sadd.s32 %s130, %s131
      %s133 = smul.addr %s132, 4
      %s134 = scalar_lea.vmem %s1, %s133
      %s135 = smul.u32 3, %s17
      %p136 = scmp.lt.s32.totalorder %s16, 1
      %s137 = scalar_select %p136, %s16, 1
      %p138 = scmp.lt.s32.totalorder %s135, 5
      %s139 = scalar_select %p138, %s135, 5
      %s140 = smul.addr %s137, 6
      %s141 = sadd.s32 %s139, %s140
      %s142 = smul.addr %s141, 4
      %s143 = scalar_lea.vmem %s0, %s142
      %s144 = smul.u32 3, %s17
      %p145 = scmp.lt.s32.totalorder %s16, 1
      %s146 = scalar_select %p145, %s16, 1
      %p147 = scmp.lt.s32.totalorder %s17, 1
      %s148 = scalar_select %p147, %s17, 1
      %s149 = smul.addr %s146, 2
      %s150 = sadd.s32 %s148, %s149
      %s151 = smul.addr %s150, 4
      %s152 = scalar_lea.vmem %s1, %s151
      %v154 = vld [vmem:[%s143] sm:$0xf]
      %v155 = vld [vmem:[%s143 + $0x4] sm:$0xf]
      %v156 = vld [vmem:[%s143 + $0x8] sm:$0xf]
      %vm157 = vcmask 523264
      %v159 = vsel %vm157, %v154, 0
      %v162 = vsel %vm157, %v155, 0
      %164 = vmatprep.subr.bf16.mxu0 0
      %165 = vmatpush1.bf16.xpose.msra.mxu0 %v162
      %166 = vmatprep.subr.bf16.mxu0 0
      %167 = vmatpush1.bf16.xpose.msra.mxu0 0
      %168 = vmatprep.subr.bf16.mxu0 0
      %169 = vmatpush1.bf16.xpose.msra.mxu0 0
      %170 = vmatprep.subr.bf16.mxu0 0
      %171 = vmatpush1.bf16.xpose.msra.mxu0 0
      %172 = vmatprep.subr.bf16.mxu0 0
      %173 = vmatpush1.bf16.xpose.msra.mxu0 0
      %174 = vmatprep.subr.bf16.mxu0 0
      %175 = vmatpush1.bf16.xpose.msra.mxu0 0
      %176 = vmatprep.subr.bf16.mxu0 0
      %177 = vmatpush1.bf16.xpose.msra.mxu0 0
      %178 = vmatprep.subr.bf16.mxu0 0
      %179 = vmatpush1.bf16.xpose.msra.mxu0 0
      %180 = vmatprep.subr.bf16.mxu0 0
      %181 = vmatpush1.bf16.xpose.msra.mxu0 0
      %182 = vmatprep.subr.bf16.mxu0 0
      %183 = vmatpush1.bf16.xpose.msra.mxu0 0
      %184 = vmatprep.subr.bf16.mxu0 0
      %185 = vmatpush1.bf16.xpose.msra.mxu0 0
      %186 = vmatprep.subr.bf16.mxu0 0
      %187 = vmatpush1.bf16.xpose.msra.mxu0 0
      %188 = vmatprep.subr.bf16.mxu0 0
      %189 = vmatpush1.bf16.xpose.msra.mxu0 0
      %190 = vmatprep.subr.bf16.mxu0 0
      %191 = vmatpush1.bf16.xpose.msra.mxu0 0
      %192 = vmatprep.subr.bf16.mxu0 0
      %193 = vmatpush1.bf16.xpose.msra.mxu0 0
      %194 = vmatprep.subr.bf16.mxu0 0
      %195 = vmatpush1.bf16.xpose.msra.mxu0 0
      %196 = vmatprep.mubr.bf16.mxu0 0
      %197 = vmatmul.mubr.bf16.gmra.mrb[0].mxu0 %v159
      %v198 = vpop.f32.mrb[0].mxu0
      %v199 = vadd.f32 0.0, %v198
      %v200 = vpop.f32.mrb[0].mxu0
      %v201 = vpop.f32.mrb[0].mxu0
      %v202 = vpop.f32.mrb[0].mxu0
      %203 = vdwg.mxu0
      %vm204 = vcmask 64512
      %v205 = vsel %vm204, %v199, -inf
      %206 = vmax.xlane.f32.xlu0 %v205
      %v207 = vpop.xlane.xlu0 %206
      %v208 = vsub.f32 %v199, %v207
      %v209 = vmul.f32 %v208, 1.442695
      %v210 = vpow.pop %v209
      %v211 = vsel %vm204, %v210, 0.0
      %212 = vadd.xlane.f32.xlu0 %v211
      %v213 = vpop.xlane.xlu0 %212
      %v214 = vpack.c.bf16 %v210, %v210
      %v216 = vsel %vm204, %v214, 0
      %vm218 = vcmask 1043456
      %v220 = vsel %vm218, %v156, 0
      %222 = vmatprep.subr.bf16.mxu0 0
      %223 = vmatpush1.bf16.msra.mxu0 %v220
      %224 = vmatprep.subr.bf16.mxu0 0
      %225 = vmatpush1.bf16.msra.mxu0 0
      %226 = vmatprep.subr.bf16.mxu0 0
      %227 = vmatpush1.bf16.msra.mxu0 0
      %228 = vmatprep.subr.bf16.mxu0 0
      %229 = vmatpush1.bf16.msra.mxu0 0
      %230 = vmatprep.subr.bf16.mxu0 0
      %231 = vmatpush1.bf16.msra.mxu0 0
      %232 = vmatprep.subr.bf16.mxu0 0
      %233 = vmatpush1.bf16.msra.mxu0 0
      %234 = vmatprep.subr.bf16.mxu0 0
      %235 = vmatpush1.bf16.msra.mxu0 0
      %236 = vmatprep.subr.bf16.mxu0 0
      %237 = vmatpush1.bf16.msra.mxu0 0
      %238 = vmatprep.subr.bf16.mxu0 0
      %239 = vmatpush1.bf16.msra.mxu0 0
      %240 = vmatprep.subr.bf16.mxu0 0
      %241 = vmatpush1.bf16.msra.mxu0 0
      %242 = vmatprep.subr.bf16.mxu0 0
      %243 = vmatpush1.bf16.msra.mxu0 0
      %244 = vmatprep.subr.bf16.mxu0 0
      %245 = vmatpush1.bf16.msra.mxu0 0
      %246 = vmatprep.subr.bf16.mxu0 0
      %247 = vmatpush1.bf16.msra.mxu0 0
      %248 = vmatprep.subr.bf16.mxu0 0
      %249 = vmatpush1.bf16.msra.mxu0 0
      %250 = vmatprep.subr.bf16.mxu0 0
      %251 = vmatpush1.bf16.msra.mxu0 0
      %252 = vmatprep.subr.bf16.mxu0 0
      %253 = vmatpush1.bf16.msra.mxu0 0
      %254 = vmatprep.mubr.bf16.mxu0 0
      %255 = vmatmul.mubr.bf16.gmra.mrb[0].mxu0 %v216
      %v256 = vpop.f32.mrb[0].mxu0
      %v257 = vadd.f32 0.0, %v256
      %v258 = vpop.f32.mrb[0].mxu0
      %v259 = vpop.f32.mrb[0].mxu0
      %v260 = vpop.f32.mrb[0].mxu0
      %261 = vdwg.mxu0
      %v262 = vrcp.pop %v213
      %v263 = vmul.f32 %v257, %v262
      %v265 = vunpack.c.l.b16 %v154
      %v266 = vpack.c.b16 %v265, %v265
      %267 = vrot.lane.b32.xlu0 %v266, 64
      %v268 = vpop.permute.xlu0 %267
      %v270 = vunpack.c.l.b16 %v155
      %v271 = vpack.c.b16 %v270, %v270
      %272 = vrot.lane.b32.xlu0 %v271, 64
      %v273 = vpop.permute.xlu0 %272
      %v275 = vsel %vm157, %v268, 0
      %v278 = vsel %vm157, %v273, 0
      %280 = vmatprep.subr.bf16.mxu0 0
      %281 = vmatpush1.bf16.xpose.msra.mxu0 %v278
      %282 = vmatprep.subr.bf16.mxu0 0
      %283 = vmatpush1.bf16.xpose.msra.mxu0 0
      %284 = vmatprep.subr.bf16.mxu0 0
      %285 = vmatpush1.bf16.xpose.msra.mxu0 0
      %286 = vmatprep.subr.bf16.mxu0 0
      %287 = vmatpush1.bf16.xpose.msra.mxu0 0
      %288 = vmatprep.subr.bf16.mxu0 0
      %289 = vmatpush1.bf16.xpose.msra.mxu0 0
      %290 = vmatprep.subr.bf16.mxu0 0
      %291 = vmatpush1.bf16.xpose.msra.mxu0 0
      %292 = vmatprep.subr.bf16.mxu0 0
      %293 = vmatpush1.bf16.xpose.msra.mxu0 0
      %294 = vmatprep.subr.bf16.mxu0 0
      %295 = vmatpush1.bf16.xpose.msra.mxu0 0
      %296 = vmatprep.subr.bf16.mxu0 0
      %297 = vmatpush1.bf16.xpose.msra.mxu0 0
      %298 = vmatprep.subr.bf16.mxu0 0
      %299 = vmatpush1.bf16.xpose.msra.mxu0 0
      %300 = vmatprep.subr.bf16.mxu0 0
      %301 = vmatpush1.bf16.xpose.msra.mxu0 0
      %302 = vmatprep.subr.bf16.mxu0 0
      %303 = vmatpush1.bf16.xpose.msra.mxu0 0
      %304 = vmatprep.subr.bf16.mxu0 0
      %305 = vmatpush1.bf16.xpose.msra.mxu0 0
      %306 = vmatprep.subr.bf16.mxu0 0
      %307 = vmatpush1.bf16.xpose.msra.mxu0 0
      %308 = vmatprep.subr.bf16.mxu0 0
      %309 = vmatpush1.bf16.xpose.msra.mxu0 0
      %310 = vmatprep.subr.bf16.mxu0 0
      %311 = vmatpush1.bf16.xpose.msra.mxu0 0
      %312 = vmatprep.mubr.bf16.mxu0 0
      %313 = vmatmul.mubr.bf16.gmra.mrb[0].mxu0 %v275
      %v314 = vpop.f32.mrb[0].mxu0
      %v315 = vadd.f32 0.0, %v314
      %v316 = vpop.f32.mrb[0].mxu0
      %v317 = vpop.f32.mrb[0].mxu0
      %v318 = vpop.f32.mrb[0].mxu0
      %319 = vdwg.mxu0
      %v320 = vsel %vm204, %v315, -inf
      %321 = vmax.xlane.f32.xlu0 %v320
      %v322 = vpop.xlane.xlu0 %321
      %v323 = vsub.f32 %v315, %v322
      %v324 = vmul.f32 %v323, 1.442695
      %v325 = vpow.pop %v324
      %v326 = vsel %vm204, %v325, 0.0
      %327 = vadd.xlane.f32.xlu0 %v326
      %v328 = vpop.xlane.xlu0 %327
      %v329 = vpack.c.bf16 %v325, %v325
      %v331 = vunpack.c.l.b16 %v156
      %v332 = vpack.c.b16 %v331, %v331
      %333 = vrot.lane.b32.xlu0 %v332, 64
      %v334 = vpop.permute.xlu0 %333
      %v336 = vsel %vm204, %v329, 0
      %v339 = vsel %vm218, %v334, 0
      %341 = vmatprep.subr.bf16.mxu0 0
      %342 = vmatpush1.bf16.msra.mxu0 %v339
      %343 = vmatprep.subr.bf16.mxu0 0
      %344 = vmatpush1.bf16.msra.mxu0 0
      %345 = vmatprep.subr.bf16.mxu0 0
      %346 = vmatpush1.bf16.msra.mxu0 0
      %347 = vmatprep.subr.bf16.mxu0 0
      %348 = vmatpush1.bf16.msra.mxu0 0
      %349 = vmatprep.subr.bf16.mxu0 0
      %350 = vmatpush1.bf16.msra.mxu0 0
      %351 = vmatprep.subr.bf16.mxu0 0
      %352 = vmatpush1.bf16.msra.mxu0 0
      %353 = vmatprep.subr.bf16.mxu0 0
      %354 = vmatpush1.bf16.msra.mxu0 0
      %355 = vmatprep.subr.bf16.mxu0 0
      %356 = vmatpush1.bf16.msra.mxu0 0
      %357 = vmatprep.subr.bf16.mxu0 0
      %358 = vmatpush1.bf16.msra.mxu0 0
      %359 = vmatprep.subr.bf16.mxu0 0
      %360 = vmatpush1.bf16.msra.mxu0 0
      %361 = vmatprep.subr.bf16.mxu0 0
      %362 = vmatpush1.bf16.msra.mxu0 0
      %363 = vmatprep.subr.bf16.mxu0 0
      %364 = vmatpush1.bf16.msra.mxu0 0
      %365 = vmatprep.subr.bf16.mxu0 0
      %366 = vmatpush1.bf16.msra.mxu0 0
      %367 = vmatprep.subr.bf16.mxu0 0
      %368 = vmatpush1.bf16.msra.mxu0 0
      %369 = vmatprep.subr.bf16.mxu0 0
      %370 = vmatpush1.bf16.msra.mxu0 0
      %371 = vmatprep.subr.bf16.mxu0 0
      %372 = vmatpush1.bf16.msra.mxu0 0
      %373 = vmatprep.mubr.bf16.mxu0 0
      %374 = vmatmul.mubr.bf16.gmra.mrb[0].mxu0 %v336
      %v375 = vpop.f32.mrb[0].mxu0
      %v376 = vadd.f32 0.0, %v375
      %v377 = vpop.f32.mrb[0].mxu0
      %v378 = vpop.f32.mrb[0].mxu0
      %v379 = vpop.f32.mrb[0].mxu0
      %380 = vdwg.mxu0
      %v381 = vrcp.pop %v328
      %v382 = vmul.f32 %v376, %v381
      %384 = vrot.lane.b32.xlu0 %v382, 64
      %v385 = vpop.permute.xlu0 %384
      %v387 = vsel %vm157, %v263, %v385
      %v388 = vpack.c.bf16 %v387, %v387
      %389 = vst [vmem:[%s152] sm:$0xf] %v388
      %p390 = scmp.lt.s32.totalorder %s16, 1
      %s391 = scalar_select %p390, %s16, 1
      %p392 = scmp.lt.s32.totalorder %s17, 1
      %s393 = scalar_select %p392, %s17, 1
      %s394 = smul.addr %s391, 2
      %s395 = sadd.s32 %s393, %s394
      %s396 = smul.addr %s395, 4
      %s397 = scalar_lea.vmem %s1, %s396
      // Predicated region
      $region25: #{transformer_encoder.6} parent=23 // pred_check
        %p398 = pneg %p72
      $region26: #{transformer_encoder.6} parent=23 // pred_check_branch
        %400 = sbr.rel (%p398) target = $region28
      $region27: #{transformer_encoder.6} parent=23 // pred_region
        _
      $region28: #{transformer_encoder.6} parent=23 // pred_fallthru
        _
    $region24: #{transformer_encoder.6} parent=5 // pred_fallthru
      _
    %p401 = scmp.le.s32.totalorder 2, %s7
    // Predicated region
    $region29: #{transformer_encoder.6} parent=5 // pred_check
      %p402 = pneg %p401
    $region30: #{transformer_encoder.6} parent=5 // pred_check_branch
      %404 = sbr.rel (%p402) target = $region32
    $region31: #{transformer_encoder.6} parent=5 // pred_region
      %s405 = ssub.s32 %s7, 2
      // Predicated region
      $region33: #{transformer_encoder.6} parent=31 // pred_check
        %p406 = pneg %p78
      $region34: #{transformer_encoder.6} parent=31 // pred_check_branch
        %408 = sbr.rel (%p406) target = $region36
      $region35: #{transformer_encoder.6} parent=31 // pred_region
        %p409 = scmp.lt.s32.totalorder %s18, 1
        %s410 = scalar_select %p409, %s18, 1
        %p411 = scmp.lt.s32.totalorder %s19, 1
        %s412 = scalar_select %p411, %s19, 1
        %s413 = smul.addr %s410, 2
        %s414 = sadd.s32 %s412, %s413
        %s415 = smul.addr %s414, 4
        %s416 = scalar_lea.vmem %s1, %s415
      $region36: #{transformer_encoder.6} parent=31 // pred_fallthru
        _
    $region32: #{transformer_encoder.6} parent=5 // pred_fallthru
      _
  $region6: #{transformer_encoder.6} parent=0 // loop_footer
    %s11 = sadd.s32 1, %s7
  $region7: #{transformer_encoder.6} parent=0 // loop_footer_branch
    %6 = sbr.rel target = $region3
  $region8: #{transformer_encoder.6} parent=0 // loop_exit
    _

// kernel: transformer_encoder.5
$region0: #{transformer_encoder.5}
  #allocation0 [shape = 'u32[]', space=smem, size = 0x4, offset = 0x4, fixed_abs, tag = 'smem constant byte address 0x4 - core index']
  #allocation1 [shape = 'u32[144,128]{1,0:T(1,128)}', space=vmem, size = 0x12000, scoped, tag = 'internal scratch']
  %s0 = inlined_call_operand.vmem [shape: f32[16,256], index: 0, kind: input, shape index: {}]
  %s1 = inlined_call_operand.vmem [shape: f32[1,256], index: 1, kind: input, shape index: {}]
  %s2 = inlined_call_operand.vmem [shape: f32[1,256], index: 2, kind: input, shape index: {}]
  %s3 = inlined_call_operand.hbm [shape: bf16[256,768], index: 3, kind: input, shape index: {}]
  %s4 = inlined_call_operand.vmem [shape: f32[1,768], index: 4, kind: input, shape index: {}]
  %s5 = inlined_call_operand.vmem [shape: bf16[16,768], index: 5, kind: output, shape index: {}]
  %s6 = sld [smem:[#allocation0]]
  $region34: #{transformer_encoder.5} parent=0
    _
  %s8 = ssub.s32 1, %s6
  %s9 = scalar_select 0, %s8, %s6
  $region1: #{transformer_encoder.5} parent=0
    #allocation2 [shape = 'u8[393216]{0}', space=vmem, size = 0x60000, scoped, tag = 'input window, operand 3, single buffered']
    #allocation3 [shape = 's32[1]{0}', space=sflag, size = 0x4, scoped, tag = 'scoped memory for transformer_encoder.5']
    %10 = vsyncpa [#allocation3], 0
    // Predicated region
    $region2: #{transformer_encoder.5} parent=1 // pred_check
      _
    $region3: #{transformer_encoder.5} parent=1 // pred_check_branch
      %12 = sbr.rel (0) target = $region5
    $region4: #{transformer_encoder.5} parent=1 // pred_region
      _
    $region5: #{transformer_encoder.5} parent=1 // pred_fallthru
      _
    // Predicated region
    $region6: #{transformer_encoder.5} parent=1 // pred_check
      _
    $region7: #{transformer_encoder.5} parent=1 // pred_check_branch
      %14 = sbr.rel (0) target = $region9
    $region8: #{transformer_encoder.5} parent=1 // pred_region
      _
    $region9: #{transformer_encoder.5} parent=1 // pred_fallthru
      _
    // Predicated region
    $region10: #{transformer_encoder.5} parent=1 // pred_check
      _
    $region11: #{transformer_encoder.5} parent=1 // pred_check_branch
      %16 = sbr.rel (0) target = $region13
    $region12: #{transformer_encoder.5} parent=1 // pred_region
      _
    $region13: #{transformer_encoder.5} parent=1 // pred_fallthru
      _
    // Predicated region
    $region14: #{transformer_encoder.5} parent=1 // pred_check
      _
    $region15: #{transformer_encoder.5} parent=1 // pred_check_branch
      %18 = sbr.rel (0) target = $region17
    $region16: #{transformer_encoder.5} parent=1 // pred_region
      %s20 = ssub.s32 12288, 12288
      %21 = vsyncadd [#allocation3], %s20
      %s22 = sshll.u32 [#allocation2], 4
      %s23 = int_to_ptr.vmem [resolvable:$true] %s22
      %28 = dma.hbm_to_vmem [thread:$0]  %s3, 12288, %s23, [#allocation3], 384, 384, 24
    $region17: #{transformer_encoder.5} parent=1 // pred_fallthru
      _
    // Predicated region
    $region18: #{transformer_encoder.5} parent=1 // pred_check
      _
    $region19: #{transformer_encoder.5} parent=1 // pred_check_branch
      %30 = sbr.rel (0) target = $region21
    $region20: #{transformer_encoder.5} parent=1 // pred_region
      _
    $region21: #{transformer_encoder.5} parent=1 // pred_fallthru
      _
    // Predicated region
    $region22: #{transformer_encoder.5} parent=1 // pred_check
      _
    $region23: #{transformer_encoder.5} parent=1 // pred_check_branch
      %32 = sbr.rel (0) target = $region25
    $region24: #{transformer_encoder.5} parent=1 // pred_region
      %33 = dma.done [#allocation3], 12288
    $region25: #{transformer_encoder.5} parent=1 // pred_fallthru
      _
    %v34 = vld [vmem:[%s0] sm:$0xff]
    %v35 = vld [vmem:[%s0 + $0x8] sm:$0xff]
    %v36 = vld [vmem:[%s0 + $0x10] sm:$0xff]
    %v37 = vld [vmem:[%s0 + $0x18] sm:$0xff]
    %v38 = vadd.f32 %v34, %v35
    %39 = vadd.xlane.f32.xlu0 %v38
    %v40 = vpop.xlane.xlu0 %39
    %v41 = vadd.f32 %v36, %v37
    %42 = vadd.xlane.f32.xlu0 %v41
    %v43 = vpop.xlane.xlu0 %42
    %v44 = vrcp.pop 256.0
    %v45 = vmul.f32 %v40, %v44
    %v46 = vmul.f32 %v43, %v44
    %v47 = vsub.f32 %v34, %v45
    %v48 = vsub.f32 %v35, %v45
    %v49 = vsub.f32 %v36, %v46
    %v50 = vsub.f32 %v37, %v46
    %v51 = vmul.f32 %v47, %v47
    %v52 = vmul.f32 %v48, %v48
    %v53 = vmul.f32 %v49, %v49
    %v54 = vmul.f32 %v50, %v50
    %v55 = vadd.f32 %v51, %v52
    %56 = vadd.xlane.f32.xlu0 %v55
    %v57 = vpop.xlane.xlu0 %56
    %v58 = vadd.f32 %v53, %v54
    %59 = vadd.xlane.f32.xlu0 %v58
    %v60 = vpop.xlane.xlu0 %59
    %v61 = vmul.f32 %v57, %v44
    %v62 = vmul.f32 %v60, %v44
    %v63 = vadd.f32 %v61, 1e-05
    %v64 = vadd.f32 %v62, 1e-05
    %v65 = vrsqrt.pop %v63
    %v66 = vrsqrt.pop %v64
    %v67 = vmul.f32 %v47, %v65
    %v68 = vmul.f32 %v48, %v65
    %v69 = vmul.f32 %v49, %v66
    %v70 = vmul.f32 %v50, %v66
    %v71 = vld [vmem:[%s1] sm:$0x3]
    %v73 = vlaneseq
    %v74 = vshrl.u32 %v73, 7
    %v75 = vsub.s32 0, %v74
    %v76 = vrot.slane %v71, %v75
    %v77 = vlaneseq
    %v78 = vshrl.u32 %v77, 7
    %v79 = vsub.s32 1, %v78
    %v80 = vrot.slane %v71, %v79
    %v83 = vmul.f32 %v67, %v76
    %v84 = vmul.f32 %v68, %v80
    %v85 = vmul.f32 %v69, %v76
    %v86 = vmul.f32 %v70, %v80
    %v87 = vld [vmem:[%s2] sm:$0x3]
    %v89 = vlaneseq
    %v90 = vshrl.u32 %v89, 7
    %v91 = vsub.s32 0, %v90
    %v92 = vrot.slane %v87, %v91
    %v93 = vlaneseq
    %v94 = vshrl.u32 %v93, 7
    %v95 = vsub.s32 1, %v94
    %v96 = vrot.slane %v87, %v95
    %v99 = vadd.f32 %v83, %v92
    %v100 = vadd.f32 %v84, %v96
    %v101 = vadd.f32 %v85, %v92
    %v102 = vadd.f32 %v86, %v96
    %v103 = vpack.c.bf16 %v101, %v99
    %v104 = vpack.c.bf16 %v102, %v100
    %v105 = vld [vmem:[#allocation2] sm:$0xff]
    %v106 = vld [vmem:[#allocation2 + $0x8] sm:$0xff]
    %v107 = vld [vmem:[#allocation2 + $0x10] sm:$0xff]
    %v108 = vld [vmem:[#allocation2 + $0x18] sm:$0xff]
    %v109 = vld [vmem:[#allocation2 + $0x20] sm:$0xff]
    %v110 = vld [vmem:[#allocation2 + $0x28] sm:$0xff]
    %v111 = vld [vmem:[#allocation2 + $0x30] sm:$0xff]
    %v112 = vld [vmem:[#allocation2 + $0x38] sm:$0xff]
    %v113 = vld [vmem:[#allocation2 + $0x40] sm:$0xff]
    %v114 = vld [vmem:[#allocation2 + $0x48] sm:$0xff]
    %v115 = vld [vmem:[#allocation2 + $0x50] sm:$0xff]
    %v116 = vld [vmem:[#allocation2 + $0x58] sm:$0xff]
    %v117 = vld [vmem:[#allocation2 + $0x60] sm:$0xff]
    %v118 = vld [vmem:[#allocation2 + $0x68] sm:$0xff]
    %v119 = vld [vmem:[#allocation2 + $0x70] sm:$0xff]
    %v120 = vld [vmem:[#allocation2 + $0x78] sm:$0xff]
    %v121 = vld [vmem:[#allocation2 + $0x80] sm:$0xff]
    %v122 = vld [vmem:[#allocation2 + $0x88] sm:$0xff]
    %v123 = vld [vmem:[#allocation2 + $0x90] sm:$0xff]
    %v124 = vld [vmem:[#allocation2 + $0x98] sm:$0xff]
    %v125 = vld [vmem:[#allocation2 + $0xa0] sm:$0xff]
    %v126 = vld [vmem:[#allocation2 + $0xa8] sm:$0xff]
    %v127 = vld [vmem:[#allocation2 + $0xb0] sm:$0xff]
    %v128 = vld [vmem:[#allocation2 + $0xb8] sm:$0xff]
    %v129 = vld [vmem:[#allocation2 + $0xc0] sm:$0xff]
    %v130 = vld [vmem:[#allocation2 + $0xc8] sm:$0xff]
    %v131 = vld [vmem:[#allocation2 + $0xd0] sm:$0xff]
    %v132 = vld [vmem:[#allocation2 + $0xd8] sm:$0xff]
    %v133 = vld [vmem:[#allocation2 + $0xe0] sm:$0xff]
    %v134 = vld [vmem:[#allocation2 + $0xe8] sm:$0xff]
    %v135 = vld [vmem:[#allocation2 + $0xf0] sm:$0xff]
    %v136 = vld [vmem:[#allocation2 + $0xf8] sm:$0xff]
    %v137 = vld [vmem:[#allocation2 + $0x100] sm:$0xff]
    %v138 = vld [vmem:[#allocation2 + $0x108] sm:$0xff]
    %v139 = vld [vmem:[#allocation2 + $0x110] sm:$0xff]
    %v140 = vld [vmem:[#allocation2 + $0x118] sm:$0xff]
    %v141 = vld [vmem:[#allocation2 + $0x120] sm:$0xff]
    %v142 = vld [vmem:[#allocation2 + $0x128] sm:$0xff]
    %v143 = vld [vmem:[#allocation2 + $0x130] sm:$0xff]
    %v144 = vld [vmem:[#allocation2 + $0x138] sm:$0xff]
    %v145 = vld [vmem:[#allocation2 + $0x140] sm:$0xff]
    %v146 = vld [vmem:[#allocation2 + $0x148] sm:$0xff]
    %v147 = vld [vmem:[#allocation2 + $0x150] sm:$0xff]
    %v148 = vld [vmem:[#allocation2 + $0x158] sm:$0xff]
    %v149 = vld [vmem:[#allocation2 + $0x160] sm:$0xff]
    %v150 = vld [vmem:[#allocation2 + $0x168] sm:$0xff]
    %v151 = vld [vmem:[#allocation2 + $0x170] sm:$0xff]
    %v152 = vld [vmem:[#allocation2 + $0x178] sm:$0xff]
    %v153 = vld [vmem:[#allocation2 + $0x180] sm:$0xff]
    %v154 = vld [vmem:[#allocation2 + $0x188] sm:$0xff]
    %v155 = vld [vmem:[#allocation2 + $0x190] sm:$0xff]
    %v156 = vld [vmem:[#allocation2 + $0x198] sm:$0xff]
    %v157 = vld [vmem:[#allocation2 + $0x1a0] sm:$0xff]
    %v158 = vld [vmem:[#allocation2 + $0x1a8] sm:$0xff]
    %v159 = vld [vmem:[#allocation2 + $0x1b0] sm:$0xff]
    %v160 = vld [vmem:[#allocation2 + $0x1b8] sm:$0xff]
    %v161 = vld [vmem:[#allocation2 + $0x1c0] sm:$0xff]
    %v162 = vld [vmem:[#allocation2 + $0x1c8] sm:$0xff]
    %v163 = vld [vmem:[#allocation2 + $0x1d0] sm:$0xff]
    %v164 = vld [vmem:[#allocation2 + $0x1d8] sm:$0xff]
    %v165 = vld [vmem:[#allocation2 + $0x1e0] sm:$0xff]
    %v166 = vld [vmem:[#allocation2 + $0x1e8] sm:$0xff]
    %v167 = vld [vmem:[#allocation2 + $0x1f0] sm:$0xff]
    %v168 = vld [vmem:[#allocation2 + $0x1f8] sm:$0xff]
    %v169 = vld [vmem:[#allocation2 + $0x200] sm:$0xff]
    %v170 = vld [vmem:[#allocation2 + $0x208] sm:$0xff]
    %v171 = vld [vmem:[#allocation2 + $0x210] sm:$0xff]
    %v172 = vld [vmem:[#allocation2 + $0x218] sm:$0xff]
    %v173 = vld [vmem:[#allocation2 + $0x220] sm:$0xff]
    %v174 = vld [vmem:[#allocation2 + $0x228] sm:$0xff]
    %v175 = vld [vmem:[#allocation2 + $0x230] sm:$0xff]
    %v176 = vld [vmem:[#allocation2 + $0x238] sm:$0xff]
    %v177 = vld [vmem:[#allocation2 + $0x240] sm:$0xff]
    %v178 = vld [vmem:[#allocation2 + $0x248] sm:$0xff]
    %v179 = vld [vmem:[#allocation2 + $0x250] sm:$0xff]
    %v180 = vld [vmem:[#allocation2 + $0x258] sm:$0xff]
    %v181 = vld [vmem:[#allocation2 + $0x260] sm:$0xff]
    %v182 = vld [vmem:[#allocation2 + $0x268] sm:$0xff]
    %v183 = vld [vmem:[#allocation2 + $0x270] sm:$0xff]
    %v184 = vld [vmem:[#allocation2 + $0x278] sm:$0xff]
    %v185 = vld [vmem:[#allocation2 + $0x280] sm:$0xff]
    %v186 = vld [vmem:[#allocation2 + $0x288] sm:$0xff]
    %v187 = vld [vmem:[#allocation2 + $0x290] sm:$0xff]
    %v188 = vld [vmem:[#allocation2 + $0x298] sm:$0xff]
    %v189 = vld [vmem:[#allocation2 + $0x2a0] sm:$0xff]
    %v190 = vld [vmem:[#allocation2 + $0x2a8] sm:$0xff]
    %v191 = vld [vmem:[#allocation2 + $0x2b0] sm:$0xff]
    %v192 = vld [vmem:[#allocation2 + $0x2b8] sm:$0xff]
    %v193 = vld [vmem:[#allocation2 + $0x2c0] sm:$0xff]
    %v194 = vld [vmem:[#allocation2 + $0x2c8] sm:$0xff]
    %v195 = vld [vmem:[#allocation2 + $0x2d0] sm:$0xff]
    %v196 = vld [vmem:[#allocation2 + $0x2d8] sm:$0xff]
    %v197 = vld [vmem:[#allocation2 + $0x2e0] sm:$0xff]
    %v198 = vld [vmem:[#allocation2 + $0x2e8] sm:$0xff]
    %v199 = vld [vmem:[#allocation2 + $0x2f0] sm:$0xff]
    %v200 = vld [vmem:[#allocation2 + $0x2f8] sm:$0xff]
    %v201 = vld [vmem:[%s4] sm:$0x3f]
    %v203 = vlaneseq
    %v204 = vshrl.u32 %v203, 7
    %v205 = vsub.s32 0, %v204
    %v206 = vrot.slane %v201, %v205
    %v207 = vlaneseq
    %v208 = vshrl.u32 %v207, 7
    %v209 = vsub.s32 1, %v208
    %v210 = vrot.slane %v201, %v209
    %v211 = vlaneseq
    %v212 = vshrl.u32 %v211, 7
    %v213 = vsub.s32 2, %v212
    %v214 = vrot.slane %v201, %v213
    %v215 = vlaneseq
    %v216 = vshrl.u32 %v215, 7
    %v217 = vsub.s32 3, %v216
    %v218 = vrot.slane %v201, %v217
    %v219 = vlaneseq
    %v220 = vshrl.u32 %v219, 7
    %v221 = vsub.s32 4, %v220
    %v222 = vrot.slane %v201, %v221
    %v223 = vlaneseq
    %v224 = vshrl.u32 %v223, 7
    %v225 = vsub.s32 5, %v224
    %v226 = vrot.slane %v201, %v225
    %v329 = vunpack.c.l.b16 %v105
    %v330 = vunpack.c.h.b16 %v105
    %v331 = vunpack.c.l.b16 %v106
    %v332 = vunpack.c.h.b16 %v106
    %v333 = vunpack.c.l.b16 %v107
    %v334 = vunpack.c.h.b16 %v107
    %v335 = vunpack.c.l.b16 %v108
    %v336 = vunpack.c.h.b16 %v108
    %v337 = vunpack.c.l.b16 %v109
    %v338 = vunpack.c.h.b16 %v109
    %v339 = vunpack.c.l.b16 %v110
    %v340 = vunpack.c.h.b16 %v110
    %v341 = vunpack.c.l.b16 %v111
    %v342 = vunpack.c.h.b16 %v111
    %v343 = vunpack.c.l.b16 %v112
    %v344 = vunpack.c.h.b16 %v112
    %v345 = vunpack.c.l.b16 %v113
    %v346 = vunpack.c.h.b16 %v113
    %v347 = vunpack.c.l.b16 %v114
    %v348 = vunpack.c.h.b16 %v114
    %v349 = vunpack.c.l.b16 %v115
    %v350 = vunpack.c.h.b16 %v115
    %v351 = vunpack.c.l.b16 %v116
    %v352 = vunpack.c.h.b16 %v116
    %v353 = vunpack.c.l.b16 %v117
    %v354 = vunpack.c.h.b16 %v117
    %v355 = vunpack.c.l.b16 %v118
    %v356 = vunpack.c.h.b16 %v118
    %v357 = vunpack.c.l.b16 %v119
    %v358 = vunpack.c.h.b16 %v119
    %v359 = vunpack.c.l.b16 %v120
    %v360 = vunpack.c.h.b16 %v120
    %v361 = vunpack.c.l.b16 %v121
    %v362 = vunpack.c.h.b16 %v121
    %v363 = vunpack.c.l.b16 %v122
    %v364 = vunpack.c.h.b16 %v122
    %v365 = vunpack.c.l.b16 %v123
    %v366 = vunpack.c.h.b16 %v123
    %v367 = vunpack.c.l.b16 %v124
    %v368 = vunpack.c.h.b16 %v124
    %v369 = vunpack.c.l.b16 %v125
    %v370 = vunpack.c.h.b16 %v125
    %v371 = vunpack.c.l.b16 %v126
    %v372 = vunpack.c.h.b16 %v126
    %v373 = vunpack.c.l.b16 %v127
    %v374 = vunpack.c.h.b16 %v127
    %v375 = vunpack.c.l.b16 %v128
    %v376 = vunpack.c.h.b16 %v128
    %v377 = vunpack.c.l.b16 %v129
    %v378 = vunpack.c.h.b16 %v129
    %v379 = vunpack.c.l.b16 %v130
    %v380 = vunpack.c.h.b16 %v130
    %v381 = vunpack.c.l.b16 %v131
    %v382 = vunpack.c.h.b16 %v131
    %v383 = vunpack.c.l.b16 %v132
    %v384 = vunpack.c.h.b16 %v132
    %v385 = vunpack.c.l.b16 %v133
    %v386 = vunpack.c.h.b16 %v133
    %v387 = vunpack.c.l.b16 %v134
    %v388 = vunpack.c.h.b16 %v134
    %v389 = vunpack.c.l.b16 %v135
    %v390 = vunpack.c.h.b16 %v135
    %v391 = vunpack.c.l.b16 %v136
    %v392 = vunpack.c.h.b16 %v136
    %v393 = vunpack.c.l.b16 %v137
    %v394 = vunpack.c.h.b16 %v137
    %v395 = vunpack.c.l.b16 %v138
    %v396 = vunpack.c.h.b16 %v138
    %v397 = vunpack.c.l.b16 %v139
    %v398 = vunpack.c.h.b16 %v139
    %v399 = vunpack.c.l.b16 %v140
    %v400 = vunpack.c.h.b16 %v140
    %v401 = vunpack.c.l.b16 %v141
    %v402 = vunpack.c.h.b16 %v141
    %v403 = vunpack.c.l.b16 %v142
    %v404 = vunpack.c.h.b16 %v142
    %v405 = vunpack.c.l.b16 %v143
    %v406 = vunpack.c.h.b16 %v143
    %v407 = vunpack.c.l.b16 %v144
    %v408 = vunpack.c.h.b16 %v144
    %v409 = vunpack.c.l.b16 %v145
    %v410 = vunpack.c.h.b16 %v145
    %v411 = vunpack.c.l.b16 %v146
    %v412 = vunpack.c.h.b16 %v146
    %v413 = vunpack.c.l.b16 %v147
    %v414 = vunpack.c.h.b16 %v147
    %v415 = vunpack.c.l.b16 %v148
    %v416 = vunpack.c.h.b16 %v148
    %v417 = vunpack.c.l.b16 %v149
    %v418 = vunpack.c.h.b16 %v149
    %v419 = vunpack.c.l.b16 %v150
    %v420 = vunpack.c.h.b16 %v150
    %v421 = vunpack.c.l.b16 %v151
    %v422 = vunpack.c.h.b16 %v151
    %v423 = vunpack.c.l.b16 %v152
    %v424 = vunpack.c.h.b16 %v152
    %v425 = vunpack.c.l.b16 %v153
    %v426 = vunpack.c.h.b16 %v153
    %v427 = vunpack.c.l.b16 %v154
    %v428 = vunpack.c.h.b16 %v154
    %v429 = vunpack.c.l.b16 %v155
    %v430 = vunpack.c.h.b16 %v155
    %v431 = vunpack.c.l.b16 %v156
    %v432 = vunpack.c.h.b16 %v156
    %v433 = vunpack.c.l.b16 %v157
    %v434 = vunpack.c.h.b16 %v157
    %v435 = vunpack.c.l.b16 %v158
    %v436 = vunpack.c.h.b16 %v158
    %v437 = vunpack.c.l.b16 %v159
    %v438 = vunpack.c.h.b16 %v159
    %v439 = vunpack.c.l.b16 %v160
    %v440 = vunpack.c.h.b16 %v160
    %v441 = vunpack.c.l.b16 %v161
    %v442 = vunpack.c.h.b16 %v161
    %v443 = vunpack.c.l.b16 %v162
    %v444 = vunpack.c.h.b16 %v162
    %v445 = vunpack.c.l.b16 %v163
    %v446 = vunpack.c.h.b16 %v163
    %v447 = vunpack.c.l.b16 %v164
    %v448 = vunpack.c.h.b16 %v164
    %v449 = vunpack.c.l.b16 %v165
    %v450 = vunpack.c.h.b16 %v165
    %v451 = vunpack.c.l.b16 %v166
    %v452 = vunpack.c.h.b16 %v166
    %v453 = vunpack.c.l.b16 %v167
    %v454 = vunpack.c.h.b16 %v167
    %v455 = vunpack.c.l.b16 %v168
    %v456 = vunpack.c.h.b16 %v168
    %v457 = vunpack.c.l.b16 %v169
    %v458 = vunpack.c.h.b16 %v169
    %v459 = vunpack.c.l.b16 %v170
    %v460 = vunpack.c.h.b16 %v170
    %v461 = vunpack.c.l.b16 %v171
    %v462 = vunpack.c.h.b16 %v171
    %v463 = vunpack.c.l.b16 %v172
    %v464 = vunpack.c.h.b16 %v172
    %v465 = vunpack.c.l.b16 %v173
    %v466 = vunpack.c.h.b16 %v173
    %v467 = vunpack.c.l.b16 %v174
    %v468 = vunpack.c.h.b16 %v174
    %v469 = vunpack.c.l.b16 %v175
    %v470 = vunpack.c.h.b16 %v175
    %v471 = vunpack.c.l.b16 %v176
    %v472 = vunpack.c.h.b16 %v176
    %v473 = vunpack.c.l.b16 %v177
    %v474 = vunpack.c.h.b16 %v177
    %v475 = vunpack.c.l.b16 %v178
    %v476 = vunpack.c.h.b16 %v178
    %v477 = vunpack.c.l.b16 %v179
    %v478 = vunpack.c.h.b16 %v179
    %v479 = vunpack.c.l.b16 %v180
    %v480 = vunpack.c.h.b16 %v180
    %v481 = vunpack.c.l.b16 %v181
    %v482 = vunpack.c.h.b16 %v181
    %v483 = vunpack.c.l.b16 %v182
    %v484 = vunpack.c.h.b16 %v182
    %v485 = vunpack.c.l.b16 %v183
    %v486 = vunpack.c.h.b16 %v183
    %v487 = vunpack.c.l.b16 %v184
    %v488 = vunpack.c.h.b16 %v184
    %v489 = vunpack.c.l.b16 %v185
    %v490 = vunpack.c.h.b16 %v185
    %v491 = vunpack.c.l.b16 %v186
    %v492 = vunpack.c.h.b16 %v186
    %v493 = vunpack.c.l.b16 %v187
    %v494 = vunpack.c.h.b16 %v187
    %v495 = vunpack.c.l.b16 %v188
    %v496 = vunpack.c.h.b16 %v188
    %v497 = vunpack.c.l.b16 %v189
    %v498 = vunpack.c.h.b16 %v189
    %v499 = vunpack.c.l.b16 %v190
    %v500 = vunpack.c.h.b16 %v190
    %v501 = vunpack.c.l.b16 %v191
    %v502 = vunpack.c.h.b16 %v191
    %v503 = vunpack.c.l.b16 %v192
    %v504 = vunpack.c.h.b16 %v192
    %v505 = vunpack.c.l.b16 %v193
    %v506 = vunpack.c.h.b16 %v193
    %v507 = vunpack.c.l.b16 %v194
    %v508 = vunpack.c.h.b16 %v194
    %v509 = vunpack.c.l.b16 %v195
    %v510 = vunpack.c.h.b16 %v195
    %v511 = vunpack.c.l.b16 %v196
    %v512 = vunpack.c.h.b16 %v196
    %v513 = vunpack.c.l.b16 %v197
    %v514 = vunpack.c.h.b16 %v197
    %v515 = vunpack.c.l.b16 %v198
    %v516 = vunpack.c.h.b16 %v198
    %v517 = vunpack.c.l.b16 %v199
    %v518 = vunpack.c.h.b16 %v199
    %v519 = vunpack.c.l.b16 %v200
    %v520 = vunpack.c.h.b16 %v200
    %v521 = vpack.c.b16 %v335, %v329
    %v522 = vpack.c.b16 %v336, %v330
    %v523 = vpack.c.b16 %v337, %v331
    %v524 = vpack.c.b16 %v338, %v332
    %v525 = vpack.c.b16 %v339, %v333
    %v526 = vpack.c.b16 %v340, %v334
    %v527 = vpack.c.b16 %v347, %v341
    %v528 = vpack.c.b16 %v348, %v342
    %v529 = vpack.c.b16 %v349, %v343
    %v530 = vpack.c.b16 %v350, %v344
    %v531 = vpack.c.b16 %v351, %v345
    %v532 = vpack.c.b16 %v352, %v346
    %v533 = vpack.c.b16 %v359, %v353
    %v534 = vpack.c.b16 %v360, %v354
    %v535 = vpack.c.b16 %v361, %v355
    %v536 = vpack.c.b16 %v362, %v356
    %v537 = vpack.c.b16 %v363, %v357
    %v538 = vpack.c.b16 %v364, %v358
    %v539 = vpack.c.b16 %v371, %v365
    %v540 = vpack.c.b16 %v372, %v366
    %v541 = vpack.c.b16 %v373, %v367
    %v542 = vpack.c.b16 %v374, %v368
    %v543 = vpack.c.b16 %v375, %v369
    %v544 = vpack.c.b16 %v376, %v370
    %v545 = vpack.c.b16 %v383, %v377
    %v546 = vpack.c.b16 %v384, %v378
    %v547 = vpack.c.b16 %v385, %v379
    %v548 = vpack.c.b16 %v386, %v380
    %v549 = vpack.c.b16 %v387, %v381
    %v550 = vpack.c.b16 %v388, %v382
    %v551 = vpack.c.b16 %v395, %v389
    %v552 = vpack.c.b16 %v396, %v390
    %v553 = vpack.c.b16 %v397, %v391
    %v554 = vpack.c.b16 %v398, %v392
    %v555 = vpack.c.b16 %v399, %v393
    %v556 = vpack.c.b16 %v400, %v394
    %v557 = vpack.c.b16 %v407, %v401
    %v558 = vpack.c.b16 %v408, %v402
    %v559 = vpack.c.b16 %v409, %v403
    %v560 = vpack.c.b16 %v410, %v404
    %v561 = vpack.c.b16 %v411, %v405
    %v562 = vpack.c.b16 %v412, %v406
    %v563 = vpack.c.b16 %v419, %v413
    %v564 = vpack.c.b16 %v420, %v414
    %v565 = vpack.c.b16 %v421, %v415
    %v566 = vpack.c.b16 %v422, %v416
    %v567 = vpack.c.b16 %v423, %v417
    %v568 = vpack.c.b16 %v424, %v418
    %v569 = vpack.c.b16 %v431, %v425
    %v570 = vpack.c.b16 %v432, %v426
    %v571 = vpack.c.b16 %v433, %v427
    %v572 = vpack.c.b16 %v434, %v428
    %v573 = vpack.c.b16 %v435, %v429
    %v574 = vpack.c.b16 %v436, %v430
    %v575 = vpack.c.b16 %v443, %v437
    %v576 = vpack.c.b16 %v444, %v438
    %v577 = vpack.c.b16 %v445, %v439
    %v578 = vpack.c.b16 %v446, %v440
    %v579 = vpack.c.b16 %v447, %v441
    %v580 = vpack.c.b16 %v448, %v442
    %v581 = vpack.c.b16 %v455, %v449
    %v582 = vpack.c.b16 %v456, %v450
    %v583 = vpack.c.b16 %v457, %v451
    %v584 = vpack.c.b16 %v458, %v452
    %v585 = vpack.c.b16 %v459, %v453
    %v586 = vpack.c.b16 %v460, %v454
    %v587 = vpack.c.b16 %v467, %v461
    %v588 = vpack.c.b16 %v468, %v462
    %v589 = vpack.c.b16 %v469, %v463
    %v590 = vpack.c.b16 %v470, %v464
    %v591 = vpack.c.b16 %v471, %v465
    %v592 = vpack.c.b16 %v472, %v466
    %v593 = vpack.c.b16 %v479, %v473
    %v594 = vpack.c.b16 %v480, %v474
    %v595 = vpack.c.b16 %v481, %v475
    %v596 = vpack.c.b16 %v482, %v476
    %v597 = vpack.c.b16 %v483, %v477
    %v598 = vpack.c.b16 %v484, %v478
    %v599 = vpack.c.b16 %v491, %v485
    %v600 = vpack.c.b16 %v492, %v486
    %v601 = vpack.c.b16 %v493, %v487
    %v602 = vpack.c.b16 %v494, %v488
    %v603 = vpack.c.b16 %v495, %v489
    %v604 = vpack.c.b16 %v496, %v490
    %v605 = vpack.c.b16 %v503, %v497
    %v606 = vpack.c.b16 %v504, %v498
    %v607 = vpack.c.b16 %v505, %v499
    %v608 = vpack.c.b16 %v506, %v500
    %v609 = vpack.c.b16 %v507, %v501
    %v610 = vpack.c.b16 %v508, %v502
    %v611 = vpack.c.b16 %v515, %v509
    %v612 = vpack.c.b16 %v516, %v510
    %v613 = vpack.c.b16 %v517, %v511
    %v614 = vpack.c.b16 %v518, %v512
    %v615 = vpack.c.b16 %v519, %v513
    %v616 = vpack.c.b16 %v520, %v514
    %713 = vmatprep.subr.bf16.mxu0 %v522
    %714 = vmatpush1.bf16.msra.mxu0 %v521
    %715 = vmatprep.subr.bf16.mxu0 %v528
    %716 = vmatpush1.bf16.msra.mxu0 %v527
    %717 = vmatprep.subr.bf16.mxu0 %v534
    %718 = vmatpush1.bf16.msra.mxu0 %v533
    %719 = vmatprep.subr.bf16.mxu0 %v540
    %720 = vmatpush1.bf16.msra.mxu0 %v539
    %721 = vmatprep.subr.bf16.mxu0 %v546
    %722 = vmatpush1.bf16.msra.mxu0 %v545
    %723 = vmatprep.subr.bf16.mxu0 %v552
    %724 = vmatpush1.bf16.msra.mxu0 %v551
    %725 = vmatprep.subr.bf16.mxu0 %v558
    %726 = vmatpush1.bf16.msra.mxu0 %v557
    %727 = vmatprep.subr.bf16.mxu0 %v564
    %728 = vmatpush1.bf16.msra.mxu0 %v563
    %729 = vmatprep.subr.bf16.mxu0 %v570
    %730 = vmatpush1.bf16.msra.mxu0 %v569
    %731 = vmatprep.subr.bf16.mxu0 %v576
    %732 = vmatpush1.bf16.msra.mxu0 %v575
    %733 = vmatprep.subr.bf16.mxu0 %v582
    %734 = vmatpush1.bf16.msra.mxu0 %v581
    %735 = vmatprep.subr.bf16.mxu0 %v588
    %736 = vmatpush1.bf16.msra.mxu0 %v587
    %737 = vmatprep.subr.bf16.mxu0 %v594
    %738 = vmatpush1.bf16.msra.mxu0 %v593
    %739 = vmatprep.subr.bf16.mxu0 %v600
    %740 = vmatpush1.bf16.msra.mxu0 %v599
    %741 = vmatprep.subr.bf16.mxu0 %v606
    %742 = vmatpush1.bf16.msra.mxu0 %v605
    %743 = vmatprep.subr.bf16.mxu0 %v612
    %744 = vmatpush1.bf16.msra.mxu0 %v611
    %745 = vmatprep.mubr.bf16.mxu0 %v104
    %746 = vmatmul.mubr.bf16.gmra.mrb[0].mxu0 %v103
    %v747 = vpop.f32.mrb[0].mxu0
    %v748 = vadd.f32 %v206, %v747
    %v749 = vpop.f32.mrb[0].mxu0
    %v750 = vadd.f32 %v210, %v749
    %v751 = vpop.f32.mrb[0].mxu0
    %v752 = vadd.f32 %v206, %v751
    %v753 = vpop.f32.mrb[0].mxu0
    %v754 = vadd.f32 %v210, %v753
    %755 = vdwg.mxu0
    %756 = vmatprep.subr.bf16.mxu0 %v524
    %757 = vmatpush1.bf16.msra.mxu0 %v523
    %758 = vmatprep.subr.bf16.mxu0 %v530
    %759 = vmatpush1.bf16.msra.mxu0 %v529
    %760 = vmatprep.subr.bf16.mxu0 %v536
    %761 = vmatpush1.bf16.msra.mxu0 %v535
    %762 = vmatprep.subr.bf16.mxu0 %v542
    %763 = vmatpush1.bf16.msra.mxu0 %v541
    %764 = vmatprep.subr.bf16.mxu0 %v548
    %765 = vmatpush1.bf16.msra.mxu0 %v547
    %766 = vmatprep.subr.bf16.mxu0 %v554
    %767 = vmatpush1.bf16.msra.mxu0 %v553
    %768 = vmatprep.subr.bf16.mxu0 %v560
    %769 = vmatpush1.bf16.msra.mxu0 %v559
    %770 = vmatprep.subr.bf16.mxu0 %v566
    %771 = vmatpush1.bf16.msra.mxu0 %v565
    %772 = vmatprep.subr.bf16.mxu0 %v572
    %773 = vmatpush1.bf16.msra.mxu0 %v571
    %774 = vmatprep.subr.bf16.mxu0 %v578
    %775 = vmatpush1.bf16.msra.mxu0 %v577
    %776 = vmatprep.subr.bf16.mxu0 %v584
    %777 = vmatpush1.bf16.msra.mxu0 %v583
    %778 = vmatprep.subr.bf16.mxu0 %v590
    %779 = vmatpush1.bf16.msra.mxu0 %v589
    %780 = vmatprep.subr.bf16.mxu0 %v596
    %781 = vmatpush1.bf16.msra.mxu0 %v595
    %782 = vmatprep.subr.bf16.mxu0 %v602
    %783 = vmatpush1.bf16.msra.mxu0 %v601
    %784 = vmatprep.subr.bf16.mxu0 %v608
    %785 = vmatpush1.bf16.msra.mxu0 %v607
    %786 = vmatprep.subr.bf16.mxu0 %v614
    %787 = vmatpush1.bf16.msra.mxu0 %v613
    %788 = vmatprep.mubr.bf16.mxu0 %v104
    %789 = vmatmul.mubr.bf16.gmra.mrb[0].mxu0 %v103
    %v790 = vpop.f32.mrb[0].mxu0
    %v791 = vadd.f32 %v214, %v790
    %v792 = vpop.f32.mrb[0].mxu0
    %v793 = vadd.f32 %v218, %v792
    %v794 = vpop.f32.mrb[0].mxu0
    %v795 = vadd.f32 %v214, %v794
    %v796 = vpop.f32.mrb[0].mxu0
    %v797 = vadd.f32 %v218, %v796
    %798 = vdwg.mxu0
    %799 = vmatprep.subr.bf16.mxu0 %v526
    %800 = vmatpush1.bf16.msra.mxu0 %v525
    %801 = vmatprep.subr.bf16.mxu0 %v532
    %802 = vmatpush1.bf16.msra.mxu0 %v531
    %803 = vmatprep.subr.bf16.mxu0 %v538
    %804 = vmatpush1.bf16.msra.mxu0 %v537
    %805 = vmatprep.subr.bf16.mxu0 %v544
    %806 = vmatpush1.bf16.msra.mxu0 %v543
    %807 = vmatprep.subr.bf16.mxu0 %v550
    %808 = vmatpush1.bf16.msra.mxu0 %v549
    %809 = vmatprep.subr.bf16.mxu0 %v556
    %810 = vmatpush1.bf16.msra.mxu0 %v555
    %811 = vmatprep.subr.bf16.mxu0 %v562
    %812 = vmatpush1.bf16.msra.mxu0 %v561
    %813 = vmatprep.subr.bf16.mxu0 %v568
    %814 = vmatpush1.bf16.msra.mxu0 %v567
    %815 = vmatprep.subr.bf16.mxu0 %v574
    %816 = vmatpush1.bf16.msra.mxu0 %v573
    %817 = vmatprep.subr.bf16.mxu0 %v580
    %818 = vmatpush1.bf16.msra.mxu0 %v579
    %819 = vmatprep.subr.bf16.mxu0 %v586
    %820 = vmatpush1.bf16.msra.mxu0 %v585
    %821 = vmatprep.subr.bf16.mxu0 %v592
    %822 = vmatpush1.bf16.msra.mxu0 %v591
    %823 = vmatprep.subr.bf16.mxu0 %v598
    %824 = vmatpush1.bf16.msra.mxu0 %v597
    %825 = vmatprep.subr.bf16.mxu0 %v604
    %826 = vmatpush1.bf16.msra.mxu0 %v603
    %827 = vmatprep.subr.bf16.mxu0 %v610
    %828 = vmatpush1.bf16.msra.mxu0 %v609
    %829 = vmatprep.subr.bf16.mxu0 %v616
    %830 = vmatpush1.bf16.msra.mxu0 %v615
    %831 = vmatprep.mubr.bf16.mxu0 %v104
    %832 = vmatmul.mubr.bf16.gmra.mrb[0].mxu0 %v103
    %v833 = vpop.f32.mrb[0].mxu0
    %v834 = vadd.f32 %v222, %v833
    %v835 = vpop.f32.mrb[0].mxu0
    %v836 = vadd.f32 %v226, %v835
    %v837 = vpop.f32.mrb[0].mxu0
    %v838 = vadd.f32 %v222, %v837
    %v839 = vpop.f32.mrb[0].mxu0
    %v840 = vadd.f32 %v226, %v839
    %841 = vdwg.mxu0
    %v842 = vpack.c.bf16 %v752, %v748
    %v843 = vpack.c.bf16 %v754, %v750
    %v844 = vpack.c.bf16 %v795, %v791
    %v845 = vpack.c.bf16 %v797, %v793
    %v846 = vpack.c.bf16 %v838, %v834
    %v847 = vpack.c.bf16 %v840, %v836
    %v854 = vunpack.c.l.b16 %v842
    %v855 = vunpack.c.l.b16 %v843
    %v856 = vunpack.c.l.b16 %v844
    %v857 = vunpack.c.l.b16 %v845
    %v858 = vunpack.c.l.b16 %v846
    %v859 = vunpack.c.l.b16 %v847
    %v860 = vunpack.c.h.b16 %v842
    %v861 = vunpack.c.h.b16 %v843
    %v862 = vunpack.c.h.b16 %v844
    %v863 = vunpack.c.h.b16 %v845
    %v864 = vunpack.c.h.b16 %v846
    %v865 = vunpack.c.h.b16 %v847
    %v866 = vpack.c.b16 %v855, %v854
    %v867 = vpack.c.b16 %v857, %v856
    %v868 = vpack.c.b16 %v859, %v858
    %v869 = vpack.c.b16 %v861, %v860
    %v870 = vpack.c.b16 %v863, %v862
    %v871 = vpack.c.b16 %v865, %v864
    %878 = vst [vmem:[%s5] sm:$0xff] %v866
    %879 = vst [vmem:[%s5 + $0x8] sm:$0xff] %v867
    %880 = vst [vmem:[%s5 + $0x10] sm:$0xff] %v868
    %881 = vst [vmem:[%s5 + $0x18] sm:$0xff] %v869
    %882 = vst [vmem:[%s5 + $0x20] sm:$0xff] %v870
    %883 = vst [vmem:[%s5 + $0x28] sm:$0xff] %v871
    // Predicated region
    $region26: #{transformer_encoder.5} parent=1 // pred_check
      _
    $region27: #{transformer_encoder.5} parent=1 // pred_check_branch
      %885 = sbr.rel (0) target = $region29
    $region28: #{transformer_encoder.5} parent=1 // pred_region
      _
    $region29: #{transformer_encoder.5} parent=1 // pred_fallthru
      _
    // Predicated region
    $region30: #{transformer_encoder.5} parent=1 // pred_check
      _
    $region31: #{transformer_encoder.5} parent=1 // pred_check_branch
      %887 = sbr.rel (0) target = $region33
    $region32: #{transformer_encoder.5} parent=1 // pred_region
      _
    $region33: #{transformer_encoder.5} parent=1 // pred_fallthru
      _
    %888 = vsyncpa [#allocation3], 1

// kernel: transformer_encoder.8
$region0: #{transformer_encoder.8}
  #allocation0 [shape = 'u32[]', space=smem, size = 0x4, offset = 0x4, fixed_abs, tag = 'smem constant byte address 0x4 - core index']
  #allocation1 [shape = 'u32[144,128]{1,0:T(1,128)}', space=vmem, size = 0x12000, scoped, tag = 'internal scratch']
  %s0 = inlined_call_operand.vmem [shape: f32[16,256], index: 0, kind: input, shape index: {}]
  %s1 = inlined_call_operand.vmem [shape: f32[1,256], index: 1, kind: input, shape index: {}]
  %s2 = inlined_call_operand.vmem [shape: f32[1,256], index: 2, kind: input, shape index: {}]
  %s3 = inlined_call_operand.vmem [shape: bf16[256,512], index: 3, kind: input, shape index: {}]
  %s4 = inlined_call_operand.vmem [shape: f32[1,512], index: 4, kind: input, shape index: {}]
  %s5 = inlined_call_operand.vmem [shape: bf16[16,512], index: 5, kind: output, shape index: {}]
  %s6 = sld [smem:[#allocation0]]
  $region30: #{transformer_encoder.8} parent=0
    _
  %s8 = ssub.s32 1, %s6
  %s9 = scalar_select 0, %s8, %s6
  // Predicated region
  $region2: #{transformer_encoder.8} parent=0 // pred_check
    _
  $region3: #{transformer_encoder.8} parent=0 // pred_check_branch
    %11 = sbr.rel (0) target = $region5
  $region4: #{transformer_encoder.8} parent=0 // pred_region
    _
  $region5: #{transformer_encoder.8} parent=0 // pred_fallthru
    _
  // Predicated region
  $region6: #{transformer_encoder.8} parent=0 // pred_check
    _
  $region7: #{transformer_encoder.8} parent=0 // pred_check_branch
    %13 = sbr.rel (0) target = $region9
  $region8: #{transformer_encoder.8} parent=0 // pred_region
    _
  $region9: #{transformer_encoder.8} parent=0 // pred_fallthru
    _
  // Predicated region
  $region10: #{transformer_encoder.8} parent=0 // pred_check
    _
  $region11: #{transformer_encoder.8} parent=0 // pred_check_branch
    %15 = sbr.rel (0) target = $region13
  $region12: #{transformer_encoder.8} parent=0 // pred_region
    _
  $region13: #{transformer_encoder.8} parent=0 // pred_fallthru
    _
  // Predicated region
  $region14: #{transformer_encoder.8} parent=0 // pred_check
    _
  $region15: #{transformer_encoder.8} parent=0 // pred_check_branch
    %17 = sbr.rel (0) target = $region17
  $region16: #{transformer_encoder.8} parent=0 // pred_region
    _
  $region17: #{transformer_encoder.8} parent=0 // pred_fallthru
    _
  // Predicated region
  $region18: #{transformer_encoder.8} parent=0 // pred_check
    _
  $region19: #{transformer_encoder.8} parent=0 // pred_check_branch
    %19 = sbr.rel (0) target = $region21
  $region20: #{transformer_encoder.8} parent=0 // pred_region
    _
  $region21: #{transformer_encoder.8} parent=0 // pred_fallthru
    _
  %v20 = vld [vmem:[%s0] sm:$0xff]
  %v21 = vld [vmem:[%s0 + $0x8] sm:$0xff]
  %v22 = vld [vmem:[%s0 + $0x10] sm:$0xff]
  %v23 = vld [vmem:[%s0 + $0x18] sm:$0xff]
  %v24 = vadd.f32 %v20, %v21
  %25 = vadd.xlane.f32.xlu0 %v24
  %v26 = vpop.xlane.xlu0 %25
  %v27 = vadd.f32 %v22, %v23
  %28 = vadd.xlane.f32.xlu0 %v27
  %v29 = vpop.xlane.xlu0 %28
  %v30 = vrcp.pop 256.0
  %v31 = vmul.f32 %v26, %v30
  %v32 = vmul.f32 %v29, %v30
  %v33 = vsub.f32 %v20, %v31
  %v34 = vsub.f32 %v21, %v31
  %v35 = vsub.f32 %v22, %v32
  %v36 = vsub.f32 %v23, %v32
  %v37 = vmul.f32 %v33, %v33
  %v38 = vmul.f32 %v34, %v34
  %v39 = vmul.f32 %v35, %v35
  %v40 = vmul.f32 %v36, %v36
  %v41 = vadd.f32 %v37, %v38
  %42 = vadd.xlane.f32.xlu0 %v41
  %v43 = vpop.xlane.xlu0 %42
  %v44 = vadd.f32 %v39, %v40
  %45 = vadd.xlane.f32.xlu0 %v44
  %v46 = vpop.xlane.xlu0 %45
  %v47 = vmul.f32 %v43, %v30
  %v48 = vmul.f32 %v46, %v30
  %v49 = vadd.f32 %v47, 1e-05
  %v50 = vadd.f32 %v48, 1e-05
  %v51 = vrsqrt.pop %v49
  %v52 = vrsqrt.pop %v50
  %v53 = vmul.f32 %v33, %v51
  %v54 = vmul.f32 %v34, %v51
  %v55 = vmul.f32 %v35, %v52
  %v56 = vmul.f32 %v36, %v52
  %v57 = vld [vmem:[%s1] sm:$0x3]
  %v59 = vlaneseq
  %v60 = vshrl.u32 %v59, 7
  %v61 = vsub.s32 0, %v60
  %v62 = vrot.slane %v57, %v61
  %v63 = vlaneseq
  %v64 = vshrl.u32 %v63, 7
  %v65 = vsub.s32 1, %v64
  %v66 = vrot.slane %v57, %v65
  %v69 = vmul.f32 %v53, %v62
  %v70 = vmul.f32 %v54, %v66
  %v71 = vmul.f32 %v55, %v62
  %v72 = vmul.f32 %v56, %v66
  %v73 = vld [vmem:[%s2] sm:$0x3]
  %v75 = vlaneseq
  %v76 = vshrl.u32 %v75, 7
  %v77 = vsub.s32 0, %v76
  %v78 = vrot.slane %v73, %v77
  %v79 = vlaneseq
  %v80 = vshrl.u32 %v79, 7
  %v81 = vsub.s32 1, %v80
  %v82 = vrot.slane %v73, %v81
  %v85 = vadd.f32 %v69, %v78
  %v86 = vadd.f32 %v70, %v82
  %v87 = vadd.f32 %v71, %v78
  %v88 = vadd.f32 %v72, %v82
  %v89 = vpack.c.bf16 %v87, %v85
  %v90 = vpack.c.bf16 %v88, %v86
  %v91 = vld [vmem:[%s3] sm:$0xff]
  %v92 = vld [vmem:[%s3 + $0x8] sm:$0xff]
  %v93 = vld [vmem:[%s3 + $0x10] sm:$0xff]
  %v94 = vld [vmem:[%s3 + $0x18] sm:$0xff]
  %v95 = vld [vmem:[%s3 + $0x20] sm:$0xff]
  %v96 = vld [vmem:[%s3 + $0x28] sm:$0xff]
  %v97 = vld [vmem:[%s3 + $0x30] sm:$0xff]
  %v98 = vld [vmem:[%s3 + $0x38] sm:$0xff]
  %v99 = vld [vmem:[%s3 + $0x40] sm:$0xff]
  %v100 = vld [vmem:[%s3 + $0x48] sm:$0xff]
  %v101 = vld [vmem:[%s3 + $0x50] sm:$0xff]
  %v102 = vld [vmem:[%s3 + $0x58] sm:$0xff]
  %v103 = vld [vmem:[%s3 + $0x60] sm:$0xff]
  %v104 = vld [vmem:[%s3 + $0x68] sm:$0xff]
  %v105 = vld [vmem:[%s3 + $0x70] sm:$0xff]
  %v106 = vld [vmem:[%s3 + $0x78] sm:$0xff]
  %v107 = vld [vmem:[%s3 + $0x80] sm:$0xff]
  %v108 = vld [vmem:[%s3 + $0x88] sm:$0xff]
  %v109 = vld [vmem:[%s3 + $0x90] sm:$0xff]
  %v110 = vld [vmem:[%s3 + $0x98] sm:$0xff]
  %v111 = vld [vmem:[%s3 + $0xa0] sm:$0xff]
  %v112 = vld [vmem:[%s3 + $0xa8] sm:$0xff]
  %v113 = vld [vmem:[%s3 + $0xb0] sm:$0xff]
  %v114 = vld [vmem:[%s3 + $0xb8] sm:$0xff]
  %v115 = vld [vmem:[%s3 + $0xc0] sm:$0xff]
  %v116 = vld [vmem:[%s3 + $0xc8] sm:$0xff]
  %v117 = vld [vmem:[%s3 + $0xd0] sm:$0xff]
  %v118 = vld [vmem:[%s3 + $0xd8] sm:$0xff]
  %v119 = vld [vmem:[%s3 + $0xe0] sm:$0xff]
  %v120 = vld [vmem:[%s3 + $0xe8] sm:$0xff]
  %v121 = vld [vmem:[%s3 + $0xf0] sm:$0xff]
  %v122 = vld [vmem:[%s3 + $0xf8] sm:$0xff]
  %v123 = vld [vmem:[%s3 + $0x100] sm:$0xff]
  %v124 = vld [vmem:[%s3 + $0x108] sm:$0xff]
  %v125 = vld [vmem:[%s3 + $0x110] sm:$0xff]
  %v126 = vld [vmem:[%s3 + $0x118] sm:$0xff]
  %v127 = vld [vmem:[%s3 + $0x120] sm:$0xff]
  %v128 = vld [vmem:[%s3 + $0x128] sm:$0xff]
  %v129 = vld [vmem:[%s3 + $0x130] sm:$0xff]
  %v130 = vld [vmem:[%s3 + $0x138] sm:$0xff]
  %v131 = vld [vmem:[%s3 + $0x140] sm:$0xff]
  %v132 = vld [vmem:[%s3 + $0x148] sm:$0xff]
  %v133 = vld [vmem:[%s3 + $0x150] sm:$0xff]
  %v134 = vld [vmem:[%s3 + $0x158] sm:$0xff]
  %v135 = vld [vmem:[%s3 + $0x160] sm:$0xff]
  %v136 = vld [vmem:[%s3 + $0x168] sm:$0xff]
  %v137 = vld [vmem:[%s3 + $0x170] sm:$0xff]
  %v138 = vld [vmem:[%s3 + $0x178] sm:$0xff]
  %v139 = vld [vmem:[%s3 + $0x180] sm:$0xff]
  %v140 = vld [vmem:[%s3 + $0x188] sm:$0xff]
  %v141 = vld [vmem:[%s3 + $0x190] sm:$0xff]
  %v142 = vld [vmem:[%s3 + $0x198] sm:$0xff]
  %v143 = vld [vmem:[%s3 + $0x1a0] sm:$0xff]
  %v144 = vld [vmem:[%s3 + $0x1a8] sm:$0xff]
  %v145 = vld [vmem:[%s3 + $0x1b0] sm:$0xff]
  %v146 = vld [vmem:[%s3 + $0x1b8] sm:$0xff]
  %v147 = vld [vmem:[%s3 + $0x1c0] sm:$0xff]
  %v148 = vld [vmem:[%s3 + $0x1c8] sm:$0xff]
  %v149 = vld [vmem:[%s3 + $0x1d0] sm:$0xff]
  %v150 = vld [vmem:[%s3 + $0x1d8] sm:$0xff]
  %v151 = vld [vmem:[%s3 + $0x1e0] sm:$0xff]
  %v152 = vld [vmem:[%s3 + $0x1e8] sm:$0xff]
  %v153 = vld [vmem:[%s3 + $0x1f0] sm:$0xff]
  %v154 = vld [vmem:[%s3 + $0x1f8] sm:$0xff]
  %v155 = vld [vmem:[%s4] sm:$0xf]
  %v157 = vlaneseq
  %v158 = vshrl.u32 %v157, 7
  %v159 = vsub.s32 0, %v158
  %v160 = vrot.slane %v155, %v159
  %v161 = vlaneseq
  %v162 = vshrl.u32 %v161, 7
  %v163 = vsub.s32 1, %v162
  %v164 = vrot.slane %v155, %v163
  %v165 = vlaneseq
  %v166 = vshrl.u32 %v165, 7
  %v167 = vsub.s32 2, %v166
  %v168 = vrot.slane %v155, %v167
  %v169 = vlaneseq
  %v170 = vshrl.u32 %v169, 7
  %v171 = vsub.s32 3, %v170
  %v172 = vrot.slane %v155, %v171
  %v241 = vunpack.c.l.b16 %v91
  %v242 = vunpack.c.h.b16 %v91
  %v243 = vunpack.c.l.b16 %v92
  %v244 = vunpack.c.h.b16 %v92
  %v245 = vunpack.c.l.b16 %v93
  %v246 = vunpack.c.h.b16 %v93
  %v247 = vunpack.c.l.b16 %v94
  %v248 = vunpack.c.h.b16 %v94
  %v249 = vunpack.c.l.b16 %v95
  %v250 = vunpack.c.h.b16 %v95
  %v251 = vunpack.c.l.b16 %v96
  %v252 = vunpack.c.h.b16 %v96
  %v253 = vunpack.c.l.b16 %v97
  %v254 = vunpack.c.h.b16 %v97
  %v255 = vunpack.c.l.b16 %v98
  %v256 = vunpack.c.h.b16 %v98
  %v257 = vunpack.c.l.b16 %v99
  %v258 = vunpack.c.h.b16 %v99
  %v259 = vunpack.c.l.b16 %v100
  %v260 = vunpack.c.h.b16 %v100
  %v261 = vunpack.c.l.b16 %v101
  %v262 = vunpack.c.h.b16 %v101
  %v263 = vunpack.c.l.b16 %v102
  %v264 = vunpack.c.h.b16 %v102
  %v265 = vunpack.c.l.b16 %v103
  %v266 = vunpack.c.h.b16 %v103
  %v267 = vunpack.c.l.b16 %v104
  %v268 = vunpack.c.h.b16 %v104
  %v269 = vunpack.c.l.b16 %v105
  %v270 = vunpack.c.h.b16 %v105
  %v271 = vunpack.c.l.b16 %v106
  %v272 = vunpack.c.h.b16 %v106
  %v273 = vunpack.c.l.b16 %v107
  %v274 = vunpack.c.h.b16 %v107
  %v275 = vunpack.c.l.b16 %v108
  %v276 = vunpack.c.h.b16 %v108
  %v277 = vunpack.c.l.b16 %v109
  %v278 = vunpack.c.h.b16 %v109
  %v279 = vunpack.c.l.b16 %v110
  %v280 = vunpack.c.h.b16 %v110
  %v281 = vunpack.c.l.b16 %v111
  %v282 = vunpack.c.h.b16 %v111
  %v283 = vunpack.c.l.b16 %v112
  %v284 = vunpack.c.h.b16 %v112
  %v285 = vunpack.c.l.b16 %v113
  %v286 = vunpack.c.h.b16 %v113
  %v287 = vunpack.c.l.b16 %v114
  %v288 = vunpack.c.h.b16 %v114
  %v289 = vunpack.c.l.b16 %v115
  %v290 = vunpack.c.h.b16 %v115
  %v291 = vunpack.c.l.b16 %v116
  %v292 = vunpack.c.h.b16 %v116
  %v293 = vunpack.c.l.b16 %v117
  %v294 = vunpack.c.h.b16 %v117
  %v295 = vunpack.c.l.b16 %v118
  %v296 = vunpack.c.h.b16 %v118
  %v297 = vunpack.c.l.b16 %v119
  %v298 = vunpack.c.h.b16 %v119
  %v299 = vunpack.c.l.b16 %v120
  %v300 = vunpack.c.h.b16 %v120
  %v301 = vunpack.c.l.b16 %v121
  %v302 = vunpack.c.h.b16 %v121
  %v303 = vunpack.c.l.b16 %v122
  %v304 = vunpack.c.h.b16 %v122
  %v305 = vunpack.c.l.b16 %v123
  %v306 = vunpack.c.h.b16 %v123
  %v307 = vunpack.c.l.b16 %v124
  %v308 = vunpack.c.h.b16 %v124
  %v309 = vunpack.c.l.b16 %v125
  %v310 = vunpack.c.h.b16 %v125
  %v311 = vunpack.c.l.b16 %v126
  %v312 = vunpack.c.h.b16 %v126
  %v313 = vunpack.c.l.b16 %v127
  %v314 = vunpack.c.h.b16 %v127
  %v315 = vunpack.c.l.b16 %v128
  %v316 = vunpack.c.h.b16 %v128
  %v317 = vunpack.c.l.b16 %v129
  %v318 = vunpack.c.h.b16 %v129
  %v319 = vunpack.c.l.b16 %v130
  %v320 = vunpack.c.h.b16 %v130
  %v321 = vunpack.c.l.b16 %v131
  %v322 = vunpack.c.h.b16 %v131
  %v323 = vunpack.c.l.b16 %v132
  %v324 = vunpack.c.h.b16 %v132
  %v325 = vunpack.c.l.b16 %v133
  %v326 = vunpack.c.h.b16 %v133
  %v327 = vunpack.c.l.b16 %v134
  %v328 = vunpack.c.h.b16 %v134
  %v329 = vunpack.c.l.b16 %v135
  %v330 = vunpack.c.h.b16 %v135
  %v331 = vunpack.c.l.b16 %v136
  %v332 = vunpack.c.h.b16 %v136
  %v333 = vunpack.c.l.b16 %v137
  %v334 = vunpack.c.h.b16 %v137
  %v335 = vunpack.c.l.b16 %v138
  %v336 = vunpack.c.h.b16 %v138
  %v337 = vunpack.c.l.b16 %v139
  %v338 = vunpack.c.h.b16 %v139
  %v339 = vunpack.c.l.b16 %v140
  %v340 = vunpack.c.h.b16 %v140
  %v341 = vunpack.c.l.b16 %v141
  %v342 = vunpack.c.h.b16 %v141
  %v343 = vunpack.c.l.b16 %v142
  %v344 = vunpack.c.h.b16 %v142
  %v345 = vunpack.c.l.b16 %v143
  %v346 = vunpack.c.h.b16 %v143
  %v347 = vunpack.c.l.b16 %v144
  %v348 = vunpack.c.h.b16 %v144
  %v349 = vunpack.c.l.b16 %v145
  %v350 = vunpack.c.h.b16 %v145
  %v351 = vunpack.c.l.b16 %v146
  %v352 = vunpack.c.h.b16 %v146
  %v353 = vunpack.c.l.b16 %v147
  %v354 = vunpack.c.h.b16 %v147
  %v355 = vunpack.c.l.b16 %v148
  %v356 = vunpack.c.h.b16 %v148
  %v357 = vunpack.c.l.b16 %v149
  %v358 = vunpack.c.h.b16 %v149
  %v359 = vunpack.c.l.b16 %v150
  %v360 = vunpack.c.h.b16 %v150
  %v361 = vunpack.c.l.b16 %v151
  %v362 = vunpack.c.h.b16 %v151
  %v363 = vunpack.c.l.b16 %v152
  %v364 = vunpack.c.h.b16 %v152
  %v365 = vunpack.c.l.b16 %v153
  %v366 = vunpack.c.h.b16 %v153
  %v367 = vunpack.c.l.b16 %v154
  %v368 = vunpack.c.h.b16 %v154
  %v369 = vpack.c.b16 %v245, %v241
  %v370 = vpack.c.b16 %v246, %v242
  %v371 = vpack.c.b16 %v247, %v243
  %v372 = vpack.c.b16 %v248, %v244
  %v373 = vpack.c.b16 %v253, %v249
  %v374 = vpack.c.b16 %v254, %v250
  %v375 = vpack.c.b16 %v255, %v251
  %v376 = vpack.c.b16 %v256, %v252
  %v377 = vpack.c.b16 %v261, %v257
  %v378 = vpack.c.b16 %v262, %v258
  %v379 = vpack.c.b16 %v263, %v259
  %v380 = vpack.c.b16 %v264, %v260
  %v381 = vpack.c.b16 %v269, %v265
  %v382 = vpack.c.b16 %v270, %v266
  %v383 = vpack.c.b16 %v271, %v267
  %v384 = vpack.c.b16 %v272, %v268
  %v385 = vpack.c.b16 %v277, %v273
  %v386 = vpack.c.b16 %v278, %v274
  %v387 = vpack.c.b16 %v279, %v275
  %v388 = vpack.c.b16 %v280, %v276
  %v389 = vpack.c.b16 %v285, %v281
  %v390 = vpack.c.b16 %v286, %v282
  %v391 = vpack.c.b16 %v287, %v283
  %v392 = vpack.c.b16 %v288, %v284
  %v393 = vpack.c.b16 %v293, %v289
  %v394 = vpack.c.b16 %v294, %v290
  %v395 = vpack.c.b16 %v295, %v291
  %v396 = vpack.c.b16 %v296, %v292
  %v397 = vpack.c.b16 %v301, %v297
  %v398 = vpack.c.b16 %v302, %v298
  %v399 = vpack.c.b16 %v303, %v299
  %v400 = vpack.c.b16 %v304, %v300
  %v401 = vpack.c.b16 %v309, %v305
  %v402 = vpack.c.b16 %v310, %v306
  %v403 = vpack.c.b16 %v311, %v307
  %v404 = vpack.c.b16 %v312, %v308
  %v405 = vpack.c.b16 %v317, %v313
  %v406 = vpack.c.b16 %v318, %v314
  %v407 = vpack.c.b16 %v319, %v315
  %v408 = vpack.c.b16 %v320, %v316
  %v409 = vpack.c.b16 %v325, %v321
  %v410 = vpack.c.b16 %v326, %v322
  %v411 = vpack.c.b16 %v327, %v323
  %v412 = vpack.c.b16 %v328, %v324
  %v413 = vpack.c.b16 %v333, %v329
  %v414 = vpack.c.b16 %v334, %v330
  %v415 = vpack.c.b16 %v335, %v331
  %v416 = vpack.c.b16 %v336, %v332
  %v417 = vpack.c.b16 %v341, %v337
  %v418 = vpack.c.b16 %v342, %v338
  %v419 = vpack.c.b16 %v343, %v339
  %v420 = vpack.c.b16 %v344, %v340
  %v421 = vpack.c.b16 %v349, %v345
  %v422 = vpack.c.b16 %v350, %v346
  %v423 = vpack.c.b16 %v351, %v347
  %v424 = vpack.c.b16 %v352, %v348
  %v425 = vpack.c.b16 %v357, %v353
  %v426 = vpack.c.b16 %v358, %v354
  %v427 = vpack.c.b16 %v359, %v355
  %v428 = vpack.c.b16 %v360, %v356
  %v429 = vpack.c.b16 %v365, %v361
  %v430 = vpack.c.b16 %v366, %v362
  %v431 = vpack.c.b16 %v367, %v363
  %v432 = vpack.c.b16 %v368, %v364
  %497 = vmatprep.subr.bf16.mxu0 %v370
  %498 = vmatpush1.bf16.msra.mxu0 %v369
  %499 = vmatprep.subr.bf16.mxu0 %v374
  %500 = vmatpush1.bf16.msra.mxu0 %v373
  %501 = vmatprep.subr.bf16.mxu0 %v378
  %502 = vmatpush1.bf16.msra.mxu0 %v377
  %503 = vmatprep.subr.bf16.mxu0 %v382
  %504 = vmatpush1.bf16.msra.mxu0 %v381
  %505 = vmatprep.subr.bf16.mxu0 %v386
  %506 = vmatpush1.bf16.msra.mxu0 %v385
  %507 = vmatprep.subr.bf16.mxu0 %v390
  %508 = vmatpush1.bf16.msra.mxu0 %v389
  %509 = vmatprep.subr.bf16.mxu0 %v394
  %510 = vmatpush1.bf16.msra.mxu0 %v393
  %511 = vmatprep.subr.bf16.mxu0 %v398
  %512 = vmatpush1.bf16.msra.mxu0 %v397
  %513 = vmatprep.subr.bf16.mxu0 %v402
  %514 = vmatpush1.bf16.msra.mxu0 %v401
  %515 = vmatprep.subr.bf16.mxu0 %v406
  %516 = vmatpush1.bf16.msra.mxu0 %v405
  %517 = vmatprep.subr.bf16.mxu0 %v410
  %518 = vmatpush1.bf16.msra.mxu0 %v409
  %519 = vmatprep.subr.bf16.mxu0 %v414
  %520 = vmatpush1.bf16.msra.mxu0 %v413
  %521 = vmatprep.subr.bf16.mxu0 %v418
  %522 = vmatpush1.bf16.msra.mxu0 %v417
  %523 = vmatprep.subr.bf16.mxu0 %v422
  %524 = vmatpush1.bf16.msra.mxu0 %v421
  %525 = vmatprep.subr.bf16.mxu0 %v426
  %526 = vmatpush1.bf16.msra.mxu0 %v425
  %527 = vmatprep.subr.bf16.mxu0 %v430
  %528 = vmatpush1.bf16.msra.mxu0 %v429
  %529 = vmatprep.mubr.bf16.mxu0 %v90
  %530 = vmatmul.mubr.bf16.gmra.mrb[0].mxu0 %v89
  %v531 = vpop.f32.mrb[0].mxu0
  %v532 = vadd.f32 %v160, %v531
  %v533 = vpop.f32.mrb[0].mxu0
  %v534 = vadd.f32 %v164, %v533
  %v535 = vpop.f32.mrb[0].mxu0
  %v536 = vadd.f32 %v160, %v535
  %v537 = vpop.f32.mrb[0].mxu0
  %v538 = vadd.f32 %v164, %v537
  %539 = vdwg.mxu0
  %540 = vmatprep.subr.bf16.mxu0 %v372
  %541 = vmatpush1.bf16.msra.mxu0 %v371
  %542 = vmatprep.subr.bf16.mxu0 %v376
  %543 = vmatpush1.bf16.msra.mxu0 %v375
  %544 = vmatprep.subr.bf16.mxu0 %v380
  %545 = vmatpush1.bf16.msra.mxu0 %v379
  %546 = vmatprep.subr.bf16.mxu0 %v384
  %547 = vmatpush1.bf16.msra.mxu0 %v383
  %548 = vmatprep.subr.bf16.mxu0 %v388
  %549 = vmatpush1.bf16.msra.mxu0 %v387
  %550 = vmatprep.subr.bf16.mxu0 %v392
  %551 = vmatpush1.bf16.msra.mxu0 %v391
  %552 = vmatprep.subr.bf16.mxu0 %v396
  %553 = vmatpush1.bf16.msra.mxu0 %v395
  %554 = vmatprep.subr.bf16.mxu0 %v400
  %555 = vmatpush1.bf16.msra.mxu0 %v399
  %556 = vmatprep.subr.bf16.mxu0 %v404
  %557 = vmatpush1.bf16.msra.mxu0 %v403
  %558 = vmatprep.subr.bf16.mxu0 %v408
  %559 = vmatpush1.bf16.msra.mxu0 %v407
  %560 = vmatprep.subr.bf16.mxu0 %v412
  %561 = vmatpush1.bf16.msra.mxu0 %v411
  %562 = vmatprep.subr.bf16.mxu0 %v416
  %563 = vmatpush1.bf16.msra.mxu0 %v415
  %564 = vmatprep.subr.bf16.mxu0 %v420
  %565 = vmatpush1.bf16.msra.mxu0 %v419
  %566 = vmatprep.subr.bf16.mxu0 %v424
  %567 = vmatpush1.bf16.msra.mxu0 %v423
  %568 = vmatprep.subr.bf16.mxu0 %v428
  %569 = vmatpush1.bf16.msra.mxu0 %v427
  %570 = vmatprep.subr.bf16.mxu0 %v432
  %571 = vmatpush1.bf16.msra.mxu0 %v431
  %572 = vmatprep.mubr.bf16.mxu0 %v90
  %573 = vmatmul.mubr.bf16.gmra.mrb[0].mxu0 %v89
  %v574 = vpop.f32.mrb[0].mxu0
  %v575 = vadd.f32 %v168, %v574
  %v576 = vpop.f32.mrb[0].mxu0
  %v577 = vadd.f32 %v172, %v576
  %v578 = vpop.f32.mrb[0].mxu0
  %v579 = vadd.f32 %v168, %v578
  %v580 = vpop.f32.mrb[0].mxu0
  %v581 = vadd.f32 %v172, %v580
  %582 = vdwg.mxu0
  %v583 = vmul.f32 %v532, 0.5
  %v584 = vmul.f32 %v534, 0.5
  %v585 = vmul.f32 %v575, 0.5
  %v586 = vmul.f32 %v577, 0.5
  %v587 = vmul.f32 %v536, 0.5
  %v588 = vmul.f32 %v538, 0.5
  %v589 = vmul.f32 %v579, 0.5
  %v590 = vmul.f32 %v581, 0.5
  %v591 = vmul.f32 %v532, 0.044715
  %v592 = vmul.f32 %v534, 0.044715
  %v593 = vmul.f32 %v575, 0.044715
  %v594 = vmul.f32 %v577, 0.044715
  %v595 = vmul.f32 %v536, 0.044715
  %v596 = vmul.f32 %v538, 0.044715
  %v597 = vmul.f32 %v579, 0.044715
  %v598 = vmul.f32 %v581, 0.044715
  %v599 = vmul.f32 %v591, %v532
  %v600 = vmul.f32 %v592, %v534
  %v601 = vmul.f32 %v593, %v575
  %v602 = vmul.f32 %v594, %v577
  %v603 = vmul.f32 %v595, %v536
  %v604 = vmul.f32 %v596, %v538
  %v605 = vmul.f32 %v597, %v579
  %v606 = vmul.f32 %v598, %v581
  %v607 = vmul.f32 %v599, %v532
  %v608 = vmul.f32 %v600, %v534
  %v609 = vmul.f32 %v601, %v575
  %v610 = vmul.f32 %v602, %v577
  %v611 = vmul.f32 %v603, %v536
  %v612 = vmul.f32 %v604, %v538
  %v613 = vmul.f32 %v605, %v579
  %v614 = vmul.f32 %v606, %v581
  %v615 = vadd.f32 %v532, %v607
  %v616 = vadd.f32 %v534, %v608
  %v617 = vadd.f32 %v575, %v609
  %v618 = vadd.f32 %v577, %v610
  %v619 = vadd.f32 %v536, %v611
  %v620 = vadd.f32 %v538, %v612
  %v621 = vadd.f32 %v579, %v613
  %v622 = vadd.f32 %v581, %v614
  %v623 = vmul.f32 %v615, 0.7978846
  %v624 = vmul.f32 %v616, 0.7978846
  %v625 = vmul.f32 %v617, 0.7978846
  %v626 = vmul.f32 %v618, 0.7978846
  %v627 = vmul.f32 %v619, 0.7978846
  %v628 = vmul.f32 %v620, 0.7978846
  %v629 = vmul.f32 %v621, 0.7978846
  %v630 = vmul.f32 %v622, 0.7978846
  %v631 = vtanh.pop %v623
  %v632 = vtanh.pop %v624
  %v633 = vtanh.pop %v625
  %v634 = vtanh.pop %v626
  %v635 = vtanh.pop %v627
  %v636 = vtanh.pop %v628
  %v637 = vtanh.pop %v629
  %v638 = vtanh.pop %v630
  %v639 = vadd.f32 %v631, 1.0
  %v640 = vadd.f32 %v632, 1.0
  %v641 = vadd.f32 %v633, 1.0
  %v642 = vadd.f32 %v634, 1.0
  %v643 = vadd.f32 %v635, 1.0
  %v644 = vadd.f32 %v636, 1.0
  %v645 = vadd.f32 %v637, 1.0
  %v646 = vadd.f32 %v638, 1.0
  %v647 = vmul.f32 %v583, %v639
  %v648 = vmul.f32 %v584, %v640
  %v649 = vmul.f32 %v585, %v641
  %v650 = vmul.f32 %v586, %v642
  %v651 = vmul.f32 %v587, %v643
  %v652 = vmul.f32 %v588, %v644
  %v653 = vmul.f32 %v589, %v645
  %v654 = vmul.f32 %v590, %v646
  %v655 = vpack.c.bf16 %v651, %v647
  %v656 = vpack.c.bf16 %v652, %v648
  %v657 = vpack.c.bf16 %v653, %v649
  %v658 = vpack.c.bf16 %v654, %v650
  %v663 = vunpack.c.l.b16 %v655
  %v664 = vunpack.c.l.b16 %v656
  %v665 = vunpack.c.l.b16 %v657
  %v666 = vunpack.c.l.b16 %v658
  %v667 = vunpack.c.h.b16 %v655
  %v668 = vunpack.c.h.b16 %v656
  %v669 = vunpack.c.h.b16 %v657
  %v670 = vunpack.c.h.b16 %v658
  %v671 = vpack.c.b16 %v664, %v663
  %v672 = vpack.c.b16 %v666, %v665
  %v673 = vpack.c.b16 %v668, %v667
  %v674 = vpack.c.b16 %v670, %v669
  %679 = vst [vmem:[%s5] sm:$0xff] %v671
  %680 = vst [vmem:[%s5 + $0x8] sm:$0xff] %v672
  %681 = vst [vmem:[%s5 + $0x10] sm:$0xff] %v673
  %682 = vst [vmem:[%s5 + $0x18] sm:$0xff] %v674
  // Predicated region
  $region22: #{transformer_encoder.8} parent=0 // pred_check
    _
  $region23: #{transformer_encoder.8} parent=0 // pred_check_branch
    %684 = sbr.rel (0) target = $region25
  $region24: #{transformer_encoder.8} parent=0 // pred_region
    _
  $region25: #{transformer_encoder.8} parent=0 // pred_fallthru
    _
  // Predicated region
  $region26: #{transformer_encoder.8} parent=0 // pred_check
    _
  $region27: #{transformer_encoder.8} parent=0 // pred_check_branch
    %686 = sbr.rel (0) target = $region29
  $region28: #{transformer_encoder.8} parent=0 // pred_region
    _
  $region29: #{transformer_encoder.8} parent=0 // pred_fallthru
    _

// kernel: transformer_encoder.9
$region0: #{transformer_encoder.9}
  #allocation0 [shape = 'u32[]', space=smem, size = 0x4, offset = 0x4, fixed_abs, tag = 'smem constant byte address 0x4 - core index']
  #allocation1 [shape = 'u32[144,128]{1,0:T(1,128)}', space=vmem, size = 0x12000, scoped, tag = 'internal scratch']
  %s0 = inlined_call_operand.vmem [shape: bf16[16,512], index: 0, kind: input, shape index: {}]
  %s1 = inlined_call_operand.vmem [shape: bf16[512,256], index: 1, kind: input, shape index: {}]
  %s2 = inlined_call_operand.vmem [shape: f32[1,256], index: 2, kind: input, shape index: {}]
  %s3 = inlined_call_operand.vmem [shape: f32[16,256], index: 3, kind: input, shape index: {}]
  %s4 = inlined_call_operand.vmem [shape: f32[16,256], index: 4, kind: output, shape index: {}]
  %s5 = sld [smem:[#allocation0]]
  $region26: #{transformer_encoder.9} parent=0
    _
  %s7 = ssub.s32 1, %s5
  %s8 = scalar_select 0, %s7, %s5
  // Predicated region
  $region2: #{transformer_encoder.9} parent=0 // pred_check
    _
  $region3: #{transformer_encoder.9} parent=0 // pred_check_branch
    %10 = sbr.rel (0) target = $region5
  $region4: #{transformer_encoder.9} parent=0 // pred_region
    _
  $region5: #{transformer_encoder.9} parent=0 // pred_fallthru
    _
  // Predicated region
  $region6: #{transformer_encoder.9} parent=0 // pred_check
    _
  $region7: #{transformer_encoder.9} parent=0 // pred_check_branch
    %12 = sbr.rel (0) target = $region9
  $region8: #{transformer_encoder.9} parent=0 // pred_region
    _
  $region9: #{transformer_encoder.9} parent=0 // pred_fallthru
    _
  // Predicated region
  $region10: #{transformer_encoder.9} parent=0 // pred_check
    _
  $region11: #{transformer_encoder.9} parent=0 // pred_check_branch
    %14 = sbr.rel (0) target = $region13
  $region12: #{transformer_encoder.9} parent=0 // pred_region
    _
  $region13: #{transformer_encoder.9} parent=0 // pred_fallthru
    _
  // Predicated region
  $region14: #{transformer_encoder.9} parent=0 // pred_check
    _
  $region15: #{transformer_encoder.9} parent=0 // pred_check_branch
    %16 = sbr.rel (0) target = $region17
  $region16: #{transformer_encoder.9} parent=0 // pred_region
    _
  $region17: #{transformer_encoder.9} parent=0 // pred_fallthru
    _
  %v17 = vld [vmem:[%s0] sm:$0xff]
  %v18 = vld [vmem:[%s0 + $0x8] sm:$0xff]
  %v19 = vld [vmem:[%s0 + $0x10] sm:$0xff]
  %v20 = vld [vmem:[%s0 + $0x18] sm:$0xff]
  %v21 = vld [vmem:[%s1] sm:$0xff]
  %v22 = vld [vmem:[%s1 + $0x8] sm:$0xff]
  %v23 = vld [vmem:[%s1 + $0x10] sm:$0xff]
  %v24 = vld [vmem:[%s1 + $0x18] sm:$0xff]
  %v25 = vld [vmem:[%s1 + $0x20] sm:$0xff]
  %v26 = vld [vmem:[%s1 + $0x28] sm:$0xff]
  %v27 = vld [vmem:[%s1 + $0x30] sm:$0xff]
  %v28 = vld [vmem:[%s1 + $0x38] sm:$0xff]
  %v29 = vld [vmem:[%s1 + $0x40] sm:$0xff]
  %v30 = vld [vmem:[%s1 + $0x48] sm:$0xff]
  %v31 = vld [vmem:[%s1 + $0x50] sm:$0xff]
  %v32 = vld [vmem:[%s1 + $0x58] sm:$0xff]
  %v33 = vld [vmem:[%s1 + $0x60] sm:$0xff]
  %v34 = vld [vmem:[%s1 + $0x68] sm:$0xff]
  %v35 = vld [vmem:[%s1 + $0x70] sm:$0xff]
  %v36 = vld [vmem:[%s1 + $0x78] sm:$0xff]
  %v37 = vld [vmem:[%s1 + $0x80] sm:$0xff]
  %v38 = vld [vmem:[%s1 + $0x88] sm:$0xff]
  %v39 = vld [vmem:[%s1 + $0x90] sm:$0xff]
  %v40 = vld [vmem:[%s1 + $0x98] sm:$0xff]
  %v41 = vld [vmem:[%s1 + $0xa0] sm:$0xff]
  %v42 = vld [vmem:[%s1 + $0xa8] sm:$0xff]
  %v43 = vld [vmem:[%s1 + $0xb0] sm:$0xff]
  %v44 = vld [vmem:[%s1 + $0xb8] sm:$0xff]
  %v45 = vld [vmem:[%s1 + $0xc0] sm:$0xff]
  %v46 = vld [vmem:[%s1 + $0xc8] sm:$0xff]
  %v47 = vld [vmem:[%s1 + $0xd0] sm:$0xff]
  %v48 = vld [vmem:[%s1 + $0xd8] sm:$0xff]
  %v49 = vld [vmem:[%s1 + $0xe0] sm:$0xff]
  %v50 = vld [vmem:[%s1 + $0xe8] sm:$0xff]
  %v51 = vld [vmem:[%s1 + $0xf0] sm:$0xff]
  %v52 = vld [vmem:[%s1 + $0xf8] sm:$0xff]
  %v53 = vld [vmem:[%s1 + $0x100] sm:$0xff]
  %v54 = vld [vmem:[%s1 + $0x108] sm:$0xff]
  %v55 = vld [vmem:[%s1 + $0x110] sm:$0xff]
  %v56 = vld [vmem:[%s1 + $0x118] sm:$0xff]
  %v57 = vld [vmem:[%s1 + $0x120] sm:$0xff]
  %v58 = vld [vmem:[%s1 + $0x128] sm:$0xff]
  %v59 = vld [vmem:[%s1 + $0x130] sm:$0xff]
  %v60 = vld [vmem:[%s1 + $0x138] sm:$0xff]
  %v61 = vld [vmem:[%s1 + $0x140] sm:$0xff]
  %v62 = vld [vmem:[%s1 + $0x148] sm:$0xff]
  %v63 = vld [vmem:[%s1 + $0x150] sm:$0xff]
  %v64 = vld [vmem:[%s1 + $0x158] sm:$0xff]
  %v65 = vld [vmem:[%s1 + $0x160] sm:$0xff]
  %v66 = vld [vmem:[%s1 + $0x168] sm:$0xff]
  %v67 = vld [vmem:[%s1 + $0x170] sm:$0xff]
  %v68 = vld [vmem:[%s1 + $0x178] sm:$0xff]
  %v69 = vld [vmem:[%s1 + $0x180] sm:$0xff]
  %v70 = vld [vmem:[%s1 + $0x188] sm:$0xff]
  %v71 = vld [vmem:[%s1 + $0x190] sm:$0xff]
  %v72 = vld [vmem:[%s1 + $0x198] sm:$0xff]
  %v73 = vld [vmem:[%s1 + $0x1a0] sm:$0xff]
  %v74 = vld [vmem:[%s1 + $0x1a8] sm:$0xff]
  %v75 = vld [vmem:[%s1 + $0x1b0] sm:$0xff]
  %v76 = vld [vmem:[%s1 + $0x1b8] sm:$0xff]
  %v77 = vld [vmem:[%s1 + $0x1c0] sm:$0xff]
  %v78 = vld [vmem:[%s1 + $0x1c8] sm:$0xff]
  %v79 = vld [vmem:[%s1 + $0x1d0] sm:$0xff]
  %v80 = vld [vmem:[%s1 + $0x1d8] sm:$0xff]
  %v81 = vld [vmem:[%s1 + $0x1e0] sm:$0xff]
  %v82 = vld [vmem:[%s1 + $0x1e8] sm:$0xff]
  %v83 = vld [vmem:[%s1 + $0x1f0] sm:$0xff]
  %v84 = vld [vmem:[%s1 + $0x1f8] sm:$0xff]
  %v85 = vld [vmem:[%s2] sm:$0x3]
  %v87 = vlaneseq
  %v88 = vshrl.u32 %v87, 7
  %v89 = vsub.s32 0, %v88
  %v90 = vrot.slane %v85, %v89
  %v91 = vlaneseq
  %v92 = vshrl.u32 %v91, 7
  %v93 = vsub.s32 1, %v92
  %v94 = vrot.slane %v85, %v93
  %v101 = vunpack.c.l.b16 %v17
  %v102 = vunpack.c.h.b16 %v17
  %v103 = vunpack.c.l.b16 %v18
  %v104 = vunpack.c.h.b16 %v18
  %v105 = vunpack.c.l.b16 %v19
  %v106 = vunpack.c.h.b16 %v19
  %v107 = vunpack.c.l.b16 %v20
  %v108 = vunpack.c.h.b16 %v20
  %v109 = vpack.c.b16 %v105, %v101
  %v110 = vpack.c.b16 %v106, %v102
  %v111 = vpack.c.b16 %v107, %v103
  %v112 = vpack.c.b16 %v108, %v104
  %v181 = vunpack.c.l.b16 %v21
  %v182 = vunpack.c.h.b16 %v21
  %v183 = vunpack.c.l.b16 %v22
  %v184 = vunpack.c.h.b16 %v22
  %v185 = vunpack.c.l.b16 %v23
  %v186 = vunpack.c.h.b16 %v23
  %v187 = vunpack.c.l.b16 %v24
  %v188 = vunpack.c.h.b16 %v24
  %v189 = vunpack.c.l.b16 %v25
  %v190 = vunpack.c.h.b16 %v25
  %v191 = vunpack.c.l.b16 %v26
  %v192 = vunpack.c.h.b16 %v26
  %v193 = vunpack.c.l.b16 %v27
  %v194 = vunpack.c.h.b16 %v27
  %v195 = vunpack.c.l.b16 %v28
  %v196 = vunpack.c.h.b16 %v28
  %v197 = vunpack.c.l.b16 %v29
  %v198 = vunpack.c.h.b16 %v29
  %v199 = vunpack.c.l.b16 %v30
  %v200 = vunpack.c.h.b16 %v30
  %v201 = vunpack.c.l.b16 %v31
  %v202 = vunpack.c.h.b16 %v31
  %v203 = vunpack.c.l.b16 %v32
  %v204 = vunpack.c.h.b16 %v32
  %v205 = vunpack.c.l.b16 %v33
  %v206 = vunpack.c.h.b16 %v33
  %v207 = vunpack.c.l.b16 %v34
  %v208 = vunpack.c.h.b16 %v34
  %v209 = vunpack.c.l.b16 %v35
  %v210 = vunpack.c.h.b16 %v35
  %v211 = vunpack.c.l.b16 %v36
  %v212 = vunpack.c.h.b16 %v36
  %v213 = vunpack.c.l.b16 %v37
  %v214 = vunpack.c.h.b16 %v37
  %v215 = vunpack.c.l.b16 %v38
  %v216 = vunpack.c.h.b16 %v38
  %v217 = vunpack.c.l.b16 %v39
  %v218 = vunpack.c.h.b16 %v39
  %v219 = vunpack.c.l.b16 %v40
  %v220 = vunpack.c.h.b16 %v40
  %v221 = vunpack.c.l.b16 %v41
  %v222 = vunpack.c.h.b16 %v41
  %v223 = vunpack.c.l.b16 %v42
  %v224 = vunpack.c.h.b16 %v42
  %v225 = vunpack.c.l.b16 %v43
  %v226 = vunpack.c.h.b16 %v43
  %v227 = vunpack.c.l.b16 %v44
  %v228 = vunpack.c.h.b16 %v44
  %v229 = vunpack.c.l.b16 %v45
  %v230 = vunpack.c.h.b16 %v45
  %v231 = vunpack.c.l.b16 %v46
  %v232 = vunpack.c.h.b16 %v46
  %v233 = vunpack.c.l.b16 %v47
  %v234 = vunpack.c.h.b16 %v47
  %v235 = vunpack.c.l.b16 %v48
  %v236 = vunpack.c.h.b16 %v48
  %v237 = vunpack.c.l.b16 %v49
  %v238 = vunpack.c.h.b16 %v49
  %v239 = vunpack.c.l.b16 %v50
  %v240 = vunpack.c.h.b16 %v50
  %v241 = vunpack.c.l.b16 %v51
  %v242 = vunpack.c.h.b16 %v51
  %v243 = vunpack.c.l.b16 %v52
  %v244 = vunpack.c.h.b16 %v52
  %v245 = vunpack.c.l.b16 %v53
  %v246 = vunpack.c.h.b16 %v53
  %v247 = vunpack.c.l.b16 %v54
  %v248 = vunpack.c.h.b16 %v54
  %v249 = vunpack.c.l.b16 %v55
  %v250 = vunpack.c.h.b16 %v55
  %v251 = vunpack.c.l.b16 %v56
  %v252 = vunpack.c.h.b16 %v56
  %v253 = vunpack.c.l.b16 %v57
  %v254 = vunpack.c.h.b16 %v57
  %v255 = vunpack.c.l.b16 %v58
  %v256 = vunpack.c.h.b16 %v58
  %v257 = vunpack.c.l.b16 %v59
  %v258 = vunpack.c.h.b16 %v59
  %v259 = vunpack.c.l.b16 %v60
  %v260 = vunpack.c.h.b16 %v60
  %v261 = vunpack.c.l.b16 %v61
  %v262 = vunpack.c.h.b16 %v61
  %v263 = vunpack.c.l.b16 %v62
  %v264 = vunpack.c.h.b16 %v62
  %v265 = vunpack.c.l.b16 %v63
  %v266 = vunpack.c.h.b16 %v63
  %v267 = vunpack.c.l.b16 %v64
  %v268 = vunpack.c.h.b16 %v64
  %v269 = vunpack.c.l.b16 %v65
  %v270 = vunpack.c.h.b16 %v65
  %v271 = vunpack.c.l.b16 %v66
  %v272 = vunpack.c.h.b16 %v66
  %v273 = vunpack.c.l.b16 %v67
  %v274 = vunpack.c.h.b16 %v67
  %v275 = vunpack.c.l.b16 %v68
  %v276 = vunpack.c.h.b16 %v68
  %v277 = vunpack.c.l.b16 %v69
  %v278 = vunpack.c.h.b16 %v69
  %v279 = vunpack.c.l.b16 %v70
  %v280 = vunpack.c.h.b16 %v70
  %v281 = vunpack.c.l.b16 %v71
  %v282 = vunpack.c.h.b16 %v71
  %v283 = vunpack.c.l.b16 %v72
  %v284 = vunpack.c.h.b16 %v72
  %v285 = vunpack.c.l.b16 %v73
  %v286 = vunpack.c.h.b16 %v73
  %v287 = vunpack.c.l.b16 %v74
  %v288 = vunpack.c.h.b16 %v74
  %v289 = vunpack.c.l.b16 %v75
  %v290 = vunpack.c.h.b16 %v75
  %v291 = vunpack.c.l.b16 %v76
  %v292 = vunpack.c.h.b16 %v76
  %v293 = vunpack.c.l.b16 %v77
  %v294 = vunpack.c.h.b16 %v77
  %v295 = vunpack.c.l.b16 %v78
  %v296 = vunpack.c.h.b16 %v78
  %v297 = vunpack.c.l.b16 %v79
  %v298 = vunpack.c.h.b16 %v79
  %v299 = vunpack.c.l.b16 %v80
  %v300 = vunpack.c.h.b16 %v80
  %v301 = vunpack.c.l.b16 %v81
  %v302 = vunpack.c.h.b16 %v81
  %v303 = vunpack.c.l.b16 %v82
  %v304 = vunpack.c.h.b16 %v82
  %v305 = vunpack.c.l.b16 %v83
  %v306 = vunpack.c.h.b16 %v83
  %v307 = vunpack.c.l.b16 %v84
  %v308 = vunpack.c.h.b16 %v84
  %v309 = vpack.c.b16 %v183, %v181
  %v310 = vpack.c.b16 %v184, %v182
  %v311 = vpack.c.b16 %v187, %v185
  %v312 = vpack.c.b16 %v188, %v186
  %v313 = vpack.c.b16 %v191, %v189
  %v314 = vpack.c.b16 %v192, %v190
  %v315 = vpack.c.b16 %v195, %v193
  %v316 = vpack.c.b16 %v196, %v194
  %v317 = vpack.c.b16 %v199, %v197
  %v318 = vpack.c.b16 %v200, %v198
  %v319 = vpack.c.b16 %v203, %v201
  %v320 = vpack.c.b16 %v204, %v202
  %v321 = vpack.c.b16 %v207, %v205
  %v322 = vpack.c.b16 %v208, %v206
  %v323 = vpack.c.b16 %v211, %v209
  %v324 = vpack.c.b16 %v212, %v210
  %v325 = vpack.c.b16 %v215, %v213
  %v326 = vpack.c.b16 %v216, %v214
  %v327 = vpack.c.b16 %v219, %v217
  %v328 = vpack.c.b16 %v220, %v218
  %v329 = vpack.c.b16 %v223, %v221
  %v330 = vpack.c.b16 %v224, %v222
  %v331 = vpack.c.b16 %v227, %v225
  %v332 = vpack.c.b16 %v228, %v226
  %v333 = vpack.c.b16 %v231, %v229
  %v334 = vpack.c.b16 %v232, %v230
  %v335 = vpack.c.b16 %v235, %v233
  %v336 = vpack.c.b16 %v236, %v234
  %v337 = vpack.c.b16 %v239, %v237
  %v338 = vpack.c.b16 %v240, %v238
  %v339 = vpack.c.b16 %v243, %v241
  %v340 = vpack.c.b16 %v244, %v242
  %v341 = vpack.c.b16 %v247, %v245
  %v342 = vpack.c.b16 %v248, %v246
  %v343 = vpack.c.b16 %v251, %v249
  %v344 = vpack.c.b16 %v252, %v250
  %v345 = vpack.c.b16 %v255, %v253
  %v346 = vpack.c.b16 %v256, %v254
  %v347 = vpack.c.b16 %v259, %v257
  %v348 = vpack.c.b16 %v260, %v258
  %v349 = vpack.c.b16 %v263, %v261
  %v350 = vpack.c.b16 %v264, %v262
  %v351 = vpack.c.b16 %v267, %v265
  %v352 = vpack.c.b16 %v268, %v266
  %v353 = vpack.c.b16 %v271, %v269
  %v354 = vpack.c.b16 %v272, %v270
  %v355 = vpack.c.b16 %v275, %v273
  %v356 = vpack.c.b16 %v276, %v274
  %v357 = vpack.c.b16 %v279, %v277
  %v358 = vpack.c.b16 %v280, %v278
  %v359 = vpack.c.b16 %v283, %v281
  %v360 = vpack.c.b16 %v284, %v282
  %v361 = vpack.c.b16 %v287, %v285
  %v362 = vpack.c.b16 %v288, %v286
  %v363 = vpack.c.b16 %v291, %v289
  %v364 = vpack.c.b16 %v292, %v290
  %v365 = vpack.c.b16 %v295, %v293
  %v366 = vpack.c.b16 %v296, %v294
  %v367 = vpack.c.b16 %v299, %v297
  %v368 = vpack.c.b16 %v300, %v298
  %v369 = vpack.c.b16 %v303, %v301
  %v370 = vpack.c.b16 %v304, %v302
  %v371 = vpack.c.b16 %v307, %v305
  %v372 = vpack.c.b16 %v308, %v306
  %437 = vmatprep.subr.bf16.mxu0 %v310
  %438 = vmatpush1.bf16.msra.mxu0 %v309
  %439 = vmatprep.subr.bf16.mxu0 %v312
  %440 = vmatpush1.bf16.msra.mxu0 %v311
  %441 = vmatprep.subr.bf16.mxu0 %v314
  %442 = vmatpush1.bf16.msra.mxu0 %v313
  %443 = vmatprep.subr.bf16.mxu0 %v316
  %444 = vmatpush1.bf16.msra.mxu0 %v315
  %445 = vmatprep.subr.bf16.mxu0 %v318
  %446 = vmatpush1.bf16.msra.mxu0 %v317
  %447 = vmatprep.subr.bf16.mxu0 %v320
  %448 = vmatpush1.bf16.msra.mxu0 %v319
  %449 = vmatprep.subr.bf16.mxu0 %v322
  %450 = vmatpush1.bf16.msra.mxu0 %v321
  %451 = vmatprep.subr.bf16.mxu0 %v324
  %452 = vmatpush1.bf16.msra.mxu0 %v323
  %453 = vmatprep.subr.bf16.mxu0 %v326
  %454 = vmatpush1.bf16.msra.mxu0 %v325
  %455 = vmatprep.subr.bf16.mxu0 %v328
  %456 = vmatpush1.bf16.msra.mxu0 %v327
  %457 = vmatprep.subr.bf16.mxu0 %v330
  %458 = vmatpush1.bf16.msra.mxu0 %v329
  %459 = vmatprep.subr.bf16.mxu0 %v332
  %460 = vmatpush1.bf16.msra.mxu0 %v331
  %461 = vmatprep.subr.bf16.mxu0 %v334
  %462 = vmatpush1.bf16.msra.mxu0 %v333
  %463 = vmatprep.subr.bf16.mxu0 %v336
  %464 = vmatpush1.bf16.msra.mxu0 %v335
  %465 = vmatprep.subr.bf16.mxu0 %v338
  %466 = vmatpush1.bf16.msra.mxu0 %v337
  %467 = vmatprep.subr.bf16.mxu0 %v340
  %468 = vmatpush1.bf16.msra.mxu0 %v339
  %469 = vmatprep.mubr.bf16.mxu0 %v110
  %470 = vmatmul.mubr.bf16.gmra.mrb[0].mxu0 %v109
  %v471 = vpop.f32.mrb[0].mxu0
  %v472 = vadd.f32 %v90, %v471
  %v473 = vpop.f32.mrb[0].mxu0
  %v474 = vadd.f32 %v94, %v473
  %v475 = vpop.f32.mrb[0].mxu0
  %v476 = vadd.f32 %v90, %v475
  %v477 = vpop.f32.mrb[0].mxu0
  %v478 = vadd.f32 %v94, %v477
  %479 = vdwg.mxu0
  %480 = vmatprep.subr.bf16.mxu0 %v342
  %481 = vmatpush1.bf16.msra.mxu0 %v341
  %482 = vmatprep.subr.bf16.mxu0 %v344
  %483 = vmatpush1.bf16.msra.mxu0 %v343
  %484 = vmatprep.subr.bf16.mxu0 %v346
  %485 = vmatpush1.bf16.msra.mxu0 %v345
  %486 = vmatprep.subr.bf16.mxu0 %v348
  %487 = vmatpush1.bf16.msra.mxu0 %v347
  %488 = vmatprep.subr.bf16.mxu0 %v350
  %489 = vmatpush1.bf16.msra.mxu0 %v349
  %490 = vmatprep.subr.bf16.mxu0 %v352
  %491 = vmatpush1.bf16.msra.mxu0 %v351
  %492 = vmatprep.subr.bf16.mxu0 %v354
  %493 = vmatpush1.bf16.msra.mxu0 %v353
  %494 = vmatprep.subr.bf16.mxu0 %v356
  %495 = vmatpush1.bf16.msra.mxu0 %v355
  %496 = vmatprep.subr.bf16.mxu0 %v358
  %497 = vmatpush1.bf16.msra.mxu0 %v357
  %498 = vmatprep.subr.bf16.mxu0 %v360
  %499 = vmatpush1.bf16.msra.mxu0 %v359
  %500 = vmatprep.subr.bf16.mxu0 %v362
  %501 = vmatpush1.bf16.msra.mxu0 %v361
  %502 = vmatprep.subr.bf16.mxu0 %v364
  %503 = vmatpush1.bf16.msra.mxu0 %v363
  %504 = vmatprep.subr.bf16.mxu0 %v366
  %505 = vmatpush1.bf16.msra.mxu0 %v365
  %506 = vmatprep.subr.bf16.mxu0 %v368
  %507 = vmatpush1.bf16.msra.mxu0 %v367
  %508 = vmatprep.subr.bf16.mxu0 %v370
  %509 = vmatpush1.bf16.msra.mxu0 %v369
  %510 = vmatprep.subr.bf16.mxu0 %v372
  %511 = vmatpush1.bf16.msra.mxu0 %v371
  %512 = vmatprep.mubr.bf16.mxu0 %v112
  %513 = vmatmul.mubr.bf16.gmra.mrb[0].mxu0 %v111
  %v514 = vpop.f32.mrb[0].mxu0
  %v515 = vadd.f32 %v472, %v514
  %v516 = vpop.f32.mrb[0].mxu0
  %v517 = vadd.f32 %v474, %v516
  %v518 = vpop.f32.mrb[0].mxu0
  %v519 = vadd.f32 %v476, %v518
  %v520 = vpop.f32.mrb[0].mxu0
  %v521 = vadd.f32 %v478, %v520
  %522 = vdwg.mxu0
  %v523 = vld [vmem:[%s3] sm:$0xff]
  %v524 = vld [vmem:[%s3 + $0x8] sm:$0xff]
  %v525 = vld [vmem:[%s3 + $0x10] sm:$0xff]
  %v526 = vld [vmem:[%s3 + $0x18] sm:$0xff]
  %v527 = vadd.f32 %v515, %v523
  %v528 = vadd.f32 %v517, %v524
  %v529 = vadd.f32 %v519, %v525
  %v530 = vadd.f32 %v521, %v526
  %531 = vst [vmem:[%s4] sm:$0xff] %v527
  %532 = vst [vmem:[%s4 + $0x8] sm:$0xff] %v528
  %533 = vst [vmem:[%s4 + $0x10] sm:$0xff] %v529
  %534 = vst [vmem:[%s4 + $0x18] sm:$0xff] %v530
  // Predicated region
  $region18: #{transformer_encoder.9} parent=0 // pred_check
    _
  $region19: #{transformer_encoder.9} parent=0 // pred_check_branch
    %536 = sbr.rel (0) target = $region21
  $region20: #{transformer_encoder.9} parent=0 // pred_region
    _
  $region21: #{transformer_encoder.9} parent=0 // pred_fallthru
    _
  // Predicated region
  $region22: #{transformer_encoder.9} parent=0 // pred_check
    _
  $region23: #{transformer_encoder.9} parent=0 // pred_check_branch
    %538 = sbr.rel (0) target = $region25
  $region24: #{transformer_encoder.9} parent=0 // pred_region
    _
  $region25: #{transformer_encoder.9} parent=0 // pred_fallthru
    _

</llo_original>
